<compile_context>
chip_gen: v7x
topology: tpu7x:2x2x1
jax: 0.10.0
libtpu: 0.0.40
codegen_flags: <defaults>
</compile_context>

<pallas_src>
from functools import partial

import jax
import jax.numpy as jnp
import numpy as np
from jax import lax
from jax.experimental import pallas as pl
from jax.experimental.pallas import tpu as pltpu

LEAKY_SLOPE = 0.01   # nn.LeakyReLU() default
BN_EPS = 1e-5        # nn.BatchNorm2d default


def _round_up(x, m):
    return ((x + m - 1) // m) * m


def _cparams():
    # 32 MiB scoped VMEM: the v7x default (half of 64 MiB physical) and an
    # explicit raise above v5e's 16 MiB default.  Tile sizes below stay far
    # under this on every generation.
    return pltpu.CompilerParams(
        dimension_semantics=("parallel",),
        vmem_limit_bytes=32 * 1024 * 1024,
    )


# --------------------------- Pallas kernels -------------------------------- #
def _conv_pool_kernel(p_ref, w_ref, b_ref, out_ref, mom_ref, *,
                      kcpad, m_valid, tile_m):
    """Fused conv (4 pooling-offset bf16 MXU matmuls) + 2x2 maxpool + bias +
    LeakyReLU, plus per-tile BatchNorm moment partials (sum, sum of squares).

    Layouts (channel-first / pixel-on-lanes):
      p_ref   : (4*Kcpad, TILE_M) bf16   stacked transposed im2col patches
      w_ref   : (Cpad,   Kcpad)  bf16
      b_ref   : (Cpad, 1)        f32
      out_ref : (Cpad, TILE_M)
      mom_ref : (1, Cpad, 2)     f32
    """
    w = w_ref[...]                                              # (Cpad, Kcpad)

    # 4 pooling-offset matmuls; progressive max keeps <=2 f32 results live.
    acc = jnp.dot(w, p_ref[0:kcpad, :], preferred_element_type=jnp.float32)
    for o in range(1, 4):
        acc = jnp.maximum(
            acc,
            jnp.dot(w, p_ref[o * kcpad:(o + 1) * kcpad, :],
                    preferred_element_type=jnp.float32))

    # Shared bias + LeakyReLU once after the max (both commute with max).
    acc = acc + b_ref[...]                                      # (Cpad, TILE_M)
    m = jnp.maximum(acc, LEAKY_SLOPE * acc)

    out_ref[...] = m.astype(out_ref.dtype)

    # BatchNorm moment partials; mask pixel columns past the true count.
    # NOTE: E[x^2]-E[x]^2 in f32 can cancel for very large M2 / magnitudes;
    # fine at these scales (a per-tile shift / Welford would fix it).
    col = pl.program_id(0) * tile_m + lax.broadcasted_iota(jnp.int32, (1, tile_m), 1)
    mv = jnp.where(col < m_valid, m, 0.0)
    mom_ref[0, :, 0:1] = jnp.sum(mv, axis=1, keepdims=True)      # (Cpad, 1)
    mom_ref[0, :, 1:2] = jnp.sum(mv * mv, axis=1, keepdims=True)


def _bn_apply_kernel(y_ref, scale_ref, shift_ref, out_ref):
    """Last-layer BN apply: per-channel affine, lane-dense in and out."""
    z = y_ref[...].astype(jnp.float32) * scale_ref[...] + shift_ref[...]
    cout = out_ref.shape[0]
    out_ref[...] = z[:cout, :].astype(out_ref.dtype)


# ------------------------------ JAX glue ----------------------------------- #
def _im2col_stacked(x_cnhw_bf16, k, kcpad, m2pad):
    """Stacked transposed im2col -> ONE (4*Kcpad, M2pad) bf16 matrix.

    Rows: pooling offset (py, px) major, then (dy, dx, cin); columns: pooled
    pixel (n, io, jo).  Lane dim (columns) is a multiple of 128 -> lane-dense
    HBM layout and DMAs.
    """
    C, N, H, W = x_cnhw_bf16.shape
    p = k // 2
    xp = jnp.pad(x_cnhw_bf16, ((0, 0), (0, 0), (p, p), (p, p)))
    Ho, Wo = H // 2, W // 2
    M2 = N * Ho * Wo
    Kc = k * k * C
    offset_blocks = []
    for py in range(2):
        for px in range(2):
            rows = []
            for dy in range(k):
                for dx in range(k):
                    sl = xp[:, :,
                            py + dy: py + dy + 2 * Ho: 2,
                            px + dx: px + dx + 2 * Wo: 2]       # (C, N, Ho, Wo)
                    rows.append(sl.reshape(C, M2))
            blk = jnp.concatenate(rows, axis=0)                  # (Kc, M2)
            blk = jnp.pad(blk, ((0, kcpad - Kc), (0, m2pad - M2)))
            offset_blocks.append(blk)
    return jnp.concatenate(offset_blocks, axis=0)                # (4*Kcpad, M2pad)


def _choose_tile_m(m2, kcpad, cpad, vmem_budget=8 << 20):
    """Lane-tile (pixel) size: multiple of 128; big enough to amortize the
    ~0.35us/step overhead, small enough for v7x's scoped VMEM, and capped at
    ceil(M2/2) so there are >=2 grid tiles for the v7x megacore."""
    # Double-buffered bf16 patches + bf16 output + in-flight f32 temps.
    per_col = 2 * (4 * kcpad * 2 + cpad * 2) + 2 * cpad * 4
    t = 1024
    while t > 128 and t * per_col > vmem_budget:
        t //= 2
    if m2 > 128:
        t = min(t, _round_up((m2 + 1) // 2, 128))
    t = min(t, _round_up(m2, 128))
    return int(max(t, 128))


def _fused_layer(x_cnhw, lp, is_last):
    """One [conv -> LeakyReLU -> maxpool(2,2) -> BN] block.

    x_cnhw: (Cin, N, H, W).  Returns (Cout, N, H//2, W//2); BN is applied here
    for the last layer (Pallas kernel) or folded into the return value for
    intermediate layers (fused by XLA into the next layer's im2col).
    """
    k, cout = lp["k"], lp["cout"]
    C, N, H, W = x_cnhw.shape
    Ho, Wo = H // 2, W // 2
    M2 = N * Ho * Wo
    Cpad, Kcpad = lp["w_pad"].shape

    TILE_M = _choose_tile_m(M2, Kcpad, Cpad)
    num_tiles = (M2 + TILE_M - 1) // TILE_M
    M2pad = num_tiles * TILE_M

    patches = _im2col_stacked(x_cnhw.astype(jnp.bfloat16), k, Kcpad, M2pad)

    flops = int(2 * 4 * M2pad * Kcpad * Cpad + 8 * M2pad * Cpad)
    bytes_accessed = int(2 * (4 * Kcpad * M2pad + Cpad * Kcpad + Cpad * M2pad)
                         + 4 * (Cpad + num_tiles * Cpad * 2))
    cost = pl.CostEstimate(flops=flops, transcendentals=0,
                           bytes_accessed=bytes_accessed)

    kern = partial(_conv_pool_kernel, kcpad=Kcpad, m_valid=M2, tile_m=TILE_M)
    pooled, mom = pl.pallas_call(
        kern,
        out_shape=(jax.ShapeDtypeStruct((Cpad, M2pad), jnp.bfloat16),
                   jax.ShapeDtypeStruct((num_tiles, Cpad, 2), jnp.float32)),
        grid=(num_tiles,),
        in_specs=[pl.BlockSpec((4 * Kcpad, TILE_M), lambda i: (0, i)),
                  pl.BlockSpec((Cpad, Kcpad), lambda i: (0, 0)),
                  pl.BlockSpec((Cpad, 1), lambda i: (0, 0))],
        out_specs=(pl.BlockSpec((Cpad, TILE_M), lambda i: (0, i)),
                   pl.BlockSpec((1, Cpad, 2), lambda i: (i, 0, 0))),
        compiler_params=_cparams(),
        cost_estimate=cost,
    )(patches, lp["w_pad"], lp["b_pad"])

    # Per-tile moment partials -> per-channel affine (training-mode BN forward).
    s1 = jnp.sum(mom[:, :, 0], axis=0)
    s2 = jnp.sum(mom[:, :, 1], axis=0)
    cnt = jnp.float32(M2)
    mean = s1 / cnt
    var = jnp.maximum(s2 / cnt - mean * mean, 0.0)     # biased variance
    inv = lax.rsqrt(var + BN_EPS)
    scale = (lp["gamma_pad"] * inv).reshape(Cpad, 1)
    shift = (lp["beta_pad"] - mean * lp["gamma_pad"] * inv).reshape(Cpad, 1)

    if is_last:
        z = pl.pallas_call(
            _bn_apply_kernel,
            out_shape=jax.ShapeDtypeStruct((cout, M2pad), jnp.float32),
            grid=(num_tiles,),
            in_specs=[pl.BlockSpec((Cpad, TILE_M), lambda i: (0, i)),
                      pl.BlockSpec((Cpad, 1), lambda i: (0, 0)),
                      pl.BlockSpec((Cpad, 1), lambda i: (0, 0))],
            out_specs=pl.BlockSpec((cout, TILE_M), lambda i: (0, i)),
            compiler_params=_cparams(),
        )(pooled, scale, shift)
        return z[:, :M2].reshape(cout, N, Ho, Wo)

    # Intermediate layer: fold BN affine into the next layer's input path.
    # XLA fuses this FMA into the next _im2col_stacked slice/concat/pad, so no
    # extra HBM pass and no extra kernel launch.
    y = pooled[:cout, :M2].astype(jnp.float32)
    z = y * scale[:cout] + shift[:cout]
    return z.reshape(cout, N, Ho, Wo)


class CNNEncoderPallas:
    """Pallas port of CNNEncoder:
    [Conv2d(pad=k//2) -> LeakyReLU -> MaxPool2d(2,2) -> BatchNorm2d]*L -> Flatten."""

    def __init__(self, input_dims, output_dims, kernel_sizes, key):
        self.layer_params = []
        for cin, cout, k in zip(input_dims, output_dims, kernel_sizes):
            key, wk, bk = jax.random.split(key, 3)
            fan_in = cin * k * k
            bound = 1.0 / float(np.sqrt(fan_in))
            # torch Conv2d layout (Cout, Cin, kh, kw), U(-1/sqrt(fan_in), +)
            w = jax.random.uniform(wk, (cout, cin, k, k), jnp.float32, -bound, bound)
            b = jax.random.uniform(bk, (cout,), jnp.float32, -bound, bound)
            kc = k * k * cin
            kcpad = _round_up(kc, 16)     # bf16 sublane pack
            cpad = _round_up(cout, 16)
            # (Cout, Kc), Kc row order (dy, dx, cin) — matches the patch rows.
            w_t = jnp.transpose(w, (0, 2, 3, 1)).reshape(cout, kc)
            w_pad = jnp.zeros((cpad, kcpad), jnp.float32).at[:cout, :kc].set(w_t)
            self.layer_params.append(dict(
                k=k, cin=cin, cout=cout,
                w=w, b=b,                                    # reference (torch layout)
                w_pad=w_pad.astype(jnp.bfloat16),
                b_pad=jnp.zeros((cpad, 1), jnp.float32).at[:cout, 0].set(b),
                gamma_pad=jnp.zeros((cpad,), jnp.float32).at[:cout].set(1.0),
                beta_pad=jnp.zeros((cpad,), jnp.float32),
            ))

    def __call__(self, x_nchw):
        x = jnp.transpose(x_nchw, (1, 0, 2, 3))              # NCHW -> CNHW (channel-first)
        n_layers = len(self.layer_params)
        for idx, lp in enumerate(self.layer_params):
            x = _fused_layer(x, lp, is_last=(idx == n_layers - 1))
        # nn.Flatten flattens the NCHW tensor -> (N, C*H*W); match that order.
        x_nchw_out = jnp.transpose(x, (1, 0, 2, 3))
        return x_nchw_out.reshape(x_nchw_out.shape[0], -1)


# ------------------------ pure-JAX reference check ------------------------- #
def reference_forward(model, x_nchw):
    x = jnp.transpose(x_nchw, (0, 2, 3, 1))
    for lp in model.layer_params:
        k = lp["k"]
        p = k // 2
        w_hwio = jnp.transpose(lp["w"], (2, 3, 1, 0))
        y = lax.conv_general_dilated(
            x, w_hwio, window_strides=(1, 1), padding=[(p, p), (p, p)],
            dimension_numbers=("NHWC", "HWIO", "NHWC"),
            precision=lax.Precision.HIGHEST) + lp["b"]
        y = jnp.where(y >= 0.0, y, LEAKY_SLOPE * y)
        y = lax.reduce_window(y, -jnp.inf, lax.max,
                              (1, 2, 2, 1), (1, 2, 2, 1), "VALID")
        mean = jnp.mean(y, axis=(0, 1, 2), keepdims=True)
        var = jnp.mean((y - mean) ** 2, axis=(0, 1, 2), keepdims=True)
        x = (y - mean) * lax.rsqrt(var + BN_EPS)             # gamma=1, beta=0
    x = jnp.transpose(x, (0, 3, 1, 2))
    return x.reshape(x.shape[0], -1)


if __name__ == "__main__":
    key = jax.random.PRNGKey(0)
    key, xk = jax.random.split(key)

    input_dims = (3, 8)
    output_dims = (8, 16)
    kernel_sizes = (3, 3)

    # N=3, 32x32: layer 1 -> M2=768 (2 tiles of 384), layer 2 -> M2=192
    # (2 tiles of 128, masked tail), exercising multi-tile + masking paths.
    x = jax.random.normal(xk, (3, 3, 32, 32), jnp.float32)   # NCHW, like PyTorch

    model = CNNEncoderPallas(input_dims, output_dims, kernel_sizes, key)
    forward = jax.jit(lambda inp: model(inp))

    out = jax.block_until_ready(forward(x))
    ref = jax.block_until_ready(reference_forward(model, x))

    assert out.shape == (3, 16 * 8 * 8), out.shape
    # bf16 MXU path vs f32-HIGHEST reference: allow a few % tolerance.
    np.testing.assert_allclose(np.asarray(out), np.asarray(ref), rtol=5e-2, atol=5e-2)
    print("KERNEL_OK")
</pallas_src>

<mosaic_0001>
module attributes {stable_mosaic.version = 11 : i64} {
  func.func @_conv_pool_kernel(%arg0: i32, %arg1: memref<128x384xbf16, #tpu.memory_space<vmem>>, %arg2: memref<16x32xbf16, #tpu.memory_space<vmem>>, %arg3: memref<16x1xf32, #tpu.memory_space<vmem>>, %arg4: memref<16x384xbf16, #tpu.memory_space<vmem>>, %arg5: memref<1x16x2xf32, #tpu.memory_space<vmem>>) attributes {dimension_semantics = [#tpu.dimension_semantics<parallel>], iteration_bounds = array<i64: 2>, scalar_prefetch = 0 : i64, scratch_operands = 0 : i64, tpu.core_type = #tpu.core_type<tc>, window_params = [{transform_indices = @transform_0, window_bounds = array<i64: 128, 384>}, {pipeline_mode = #tpu.pipeline_mode<synchronous>, transform_indices = @transform_1, window_bounds = array<i64: 16, 32>}, {pipeline_mode = #tpu.pipeline_mode<synchronous>, transform_indices = @transform_2, window_bounds = array<i64: 16, 1>}, {transform_indices = @transform_3, window_bounds = array<i64: 16, 384>}, {transform_indices = @transform_4, window_bounds = array<i64: 1, 16, 2>}]} {
    %c0 = arith.constant 0 : index
    %c0_0 = arith.constant 0 : index
    %0 = vector.load %arg2[%c0, %c0_0] : memref<16x32xbf16, #tpu.memory_space<vmem>>, vector<16x32xbf16>
    %c0_1 = arith.constant 0 : index
    %c0_2 = arith.constant 0 : index
    %1 = vector.load %arg1[%c0_1, %c0_2] : memref<128x384xbf16, #tpu.memory_space<vmem>>, vector<32x384xbf16>
    %cst = arith.constant dense<0.000000e+00> : vector<16x384xf32>
    %2 = tpu.matmul %0, %1, %cst {dimension_numbers = #tpu.dot_dimension_numbers<[1], [0], [0], [1], [0, 0, 1, 1], [], []>} : vector<16x32xbf16>, vector<32x384xbf16>, vector<16x384xf32> -> vector<16x384xf32>
    %c32 = arith.constant 32 : index
    %c0_3 = arith.constant 0 : index
    %3 = vector.load %arg1[%c32, %c0_3] : memref<128x384xbf16, #tpu.memory_space<vmem>>, vector<32x384xbf16>
    %cst_4 = arith.constant dense<0.000000e+00> : vector<16x384xf32>
    %4 = tpu.matmul %0, %3, %cst_4 {dimension_numbers = #tpu.dot_dimension_numbers<[1], [0], [0], [1], [0, 0, 1, 1], [], []>} : vector<16x32xbf16>, vector<32x384xbf16>, vector<16x384xf32> -> vector<16x384xf32>
    %5 = arith.maximumf %2, %4 : vector<16x384xf32>
    %c64 = arith.constant 64 : index
    %c0_5 = arith.constant 0 : index
    %6 = vector.load %arg1[%c64, %c0_5] : memref<128x384xbf16, #tpu.memory_space<vmem>>, vector<32x384xbf16>
    %cst_6 = arith.constant dense<0.000000e+00> : vector<16x384xf32>
    %7 = tpu.matmul %0, %6, %cst_6 {dimension_numbers = #tpu.dot_dimension_numbers<[1], [0], [0], [1], [0, 0, 1, 1], [], []>} : vector<16x32xbf16>, vector<32x384xbf16>, vector<16x384xf32> -> vector<16x384xf32>
    %8 = arith.maximumf %5, %7 : vector<16x384xf32>
    %c96 = arith.constant 96 : index
    %c0_7 = arith.constant 0 : index
    %9 = vector.load %arg1[%c96, %c0_7] : memref<128x384xbf16, #tpu.memory_space<vmem>>, vector<32x384xbf16>
    %cst_8 = arith.constant dense<0.000000e+00> : vector<16x384xf32>
    %10 = tpu.matmul %0, %9, %cst_8 {dimension_numbers = #tpu.dot_dimension_numbers<[1], [0], [0], [1], [0, 0, 1, 1], [], []>} : vector<16x32xbf16>, vector<32x384xbf16>, vector<16x384xf32> -> vector<16x384xf32>
    %11 = arith.maximumf %8, %10 : vector<16x384xf32>
    %c0_9 = arith.constant 0 : index
    %c0_10 = arith.constant 0 : index
    %12 = vector.load %arg3[%c0_9, %c0_10] : memref<16x1xf32, #tpu.memory_space<vmem>>, vector<16x1xf32>
    %13 = vector.broadcast %12 : vector<16x1xf32> to vector<16x384xf32>
    %14 = arith.addf %11, %13 : vector<16x384xf32>
    %cst_11 = arith.constant 0.00999999977 : f32
    %15 = vector.broadcast %cst_11 : f32 to vector<16x384xf32>
    %16 = arith.mulf %15, %14 : vector<16x384xf32>
    %17 = arith.maximumf %14, %16 : vector<16x384xf32>
    %18 = arith.truncf %17 : vector<16x384xf32> to vector<16x384xbf16>
    %c0_12 = arith.constant 0 : index
    %c0_13 = arith.constant 0 : index
    %19 = vector.load %arg4[%c0_12, %c0_13] : memref<16x384xbf16, #tpu.memory_space<vmem>>, vector<16x384xbf16>
    tpu.vector_store %arg4[%c0_12, %c0_13], %18 {strides = array<i32>} : memref<16x384xbf16, #tpu.memory_space<vmem>>, vector<16x384xbf16>,
    %c384_i32 = arith.constant 384 : i32
    %20 = arith.muli %arg0, %c384_i32 : i32
    %21 = tpu.iota {dimensions = array<i32: 1>} : vector<1x384xi32>
    %22 = vector.broadcast %20 : i32 to vector<1x384xi32>
    %23 = arith.addi %22, %21 : vector<1x384xi32>
    %c768_i32 = arith.constant 768 : i32
    %24 = vector.broadcast %c768_i32 : i32 to vector<1x384xi32>
    %25 = arith.cmpi slt, %23, %24 : vector<1x384xi32>
    %cst_14 = arith.constant 0.000000e+00 : f32
    %26 = vector.shape_cast %25 : vector<1x384xi1> to vector<1x384xi1>
    %27 = vector.broadcast %26 : vector<1x384xi1> to vector<16x384xi1>
    %28 = vector.broadcast %cst_14 : f32 to vector<16x384xf32>
    %29 = arith.select %27, %17, %28 : vector<16x384xi1>, vector<16x384xf32>
    %cst_15 = arith.constant dense<0.000000e+00> : vector<16xf32>
    %30 = vector.multi_reduction <add>, %29, %cst_15 [1] : vector<16x384xf32> to vector<16xf32>
    %31 = vector.shape_cast %30 : vector<16xf32> to vector<16x1xf32>
    %c0_16 = arith.constant 0 : index
    %c0_17 = arith.constant 0 : index
    %c0_18 = arith.constant 0 : index
    %32 = vector.load %arg5[%c0_16, %c0_17, %c0_18] : memref<1x16x2xf32, #tpu.memory_space<vmem>>, vector<1x16x1xf32>
    %33 = vector.shape_cast %32 : vector<1x16x1xf32> to vector<16x1xf32>
    %34 = vector.shape_cast %31 : vector<16x1xf32> to vector<1x16x1xf32>
    tpu.vector_store %arg5[%c0_16, %c0_17, %c0_18], %34 {strides = array<i32>} : memref<1x16x2xf32, #tpu.memory_space<vmem>>, vector<1x16x1xf32>,
    %35 = arith.mulf %29, %29 : vector<16x384xf32>
    %cst_19 = arith.constant dense<0.000000e+00> : vector<16xf32>
    %36 = vector.multi_reduction <add>, %35, %cst_19 [1] : vector<16x384xf32> to vector<16xf32>
    %37 = vector.shape_cast %36 : vector<16xf32> to vector<16x1xf32>
    %c0_20 = arith.constant 0 : index
    %c0_21 = arith.constant 0 : index
    %c1 = arith.constant 1 : index
    %38 = vector.load %arg5[%c0_20, %c0_21, %c1] : memref<1x16x2xf32, #tpu.memory_space<vmem>>, vector<1x16x1xf32>
    %39 = vector.shape_cast %38 : vector<1x16x1xf32> to vector<16x1xf32>
    %40 = vector.shape_cast %37 : vector<16x1xf32> to vector<1x16x1xf32>
    tpu.vector_store %arg5[%c0_20, %c0_21, %c1], %40 {strides = array<i32>} : memref<1x16x2xf32, #tpu.memory_space<vmem>>, vector<1x16x1xf32>,
    return
  }
  func.func @transform_0(%arg0: i32) -> (i32, i32) {
    %c0_i32 = arith.constant 0 : i32
    %c0_i32_0 = arith.constant 0 : i32
    return %c0_i32, %arg0 : i32, i32
  }
  func.func @transform_1(%arg0: i32) -> (i32, i32) {
    %c0_i32 = arith.constant 0 : i32
    %c0_i32_0 = arith.constant 0 : i32
    %c0_i32_1 = arith.constant 0 : i32
    return %c0_i32, %c0_i32_0 : i32, i32
  }
  func.func @transform_2(%arg0: i32) -> (i32, i32) {
    %c0_i32 = arith.constant 0 : i32
    %c0_i32_0 = arith.constant 0 : i32
    %c0_i32_1 = arith.constant 0 : i32
    return %c0_i32, %c0_i32_0 : i32, i32
  }
  func.func @transform_3(%arg0: i32) -> (i32, i32) {
    %c0_i32 = arith.constant 0 : i32
    %c0_i32_0 = arith.constant 0 : i32
    return %c0_i32, %arg0 : i32, i32
  }
  func.func @transform_4(%arg0: i32) -> (i32, i32, i32) {
    %c0_i32 = arith.constant 0 : i32
    %c0_i32_0 = arith.constant 0 : i32
    %c0_i32_1 = arith.constant 0 : i32
    return %arg0, %c0_i32, %c0_i32_0 : i32, i32, i32
  }
}

module attributes {stable_mosaic.version = 11 : i64} {
  func.func @_conv_pool_kernel(%arg0: i32, %arg1: memref<320x128xbf16, #tpu.memory_space<vmem>>, %arg2: memref<16x80xbf16, #tpu.memory_space<vmem>>, %arg3: memref<16x1xf32, #tpu.memory_space<vmem>>, %arg4: memref<16x128xbf16, #tpu.memory_space<vmem>>, %arg5: memref<1x16x2xf32, #tpu.memory_space<vmem>>) attributes {dimension_semantics = [#tpu.dimension_semantics<parallel>], iteration_bounds = array<i64: 2>, scalar_prefetch = 0 : i64, scratch_operands = 0 : i64, tpu.core_type = #tpu.core_type<tc>, window_params = [{transform_indices = @transform_0, window_bounds = array<i64: 320, 128>}, {pipeline_mode = #tpu.pipeline_mode<synchronous>, transform_indices = @transform_1, window_bounds = array<i64: 16, 80>}, {pipeline_mode = #tpu.pipeline_mode<synchronous>, transform_indices = @transform_2, window_bounds = array<i64: 16, 1>}, {transform_indices = @transform_3, window_bounds = array<i64: 16, 128>}, {transform_indices = @transform_4, window_bounds = array<i64: 1, 16, 2>}]} {
    %c0 = arith.constant 0 : index
    %c0_0 = arith.constant 0 : index
    %0 = vector.load %arg2[%c0, %c0_0] : memref<16x80xbf16, #tpu.memory_space<vmem>>, vector<16x80xbf16>
    %c0_1 = arith.constant 0 : index
    %c0_2 = arith.constant 0 : index
    %1 = vector.load %arg1[%c0_1, %c0_2] : memref<320x128xbf16, #tpu.memory_space<vmem>>, vector<80x128xbf16>
    %cst = arith.constant dense<0.000000e+00> : vector<16x128xf32>
    %2 = tpu.matmul %0, %1, %cst {dimension_numbers = #tpu.dot_dimension_numbers<[1], [0], [0], [1], [0, 0, 1, 1], [], []>} : vector<16x80xbf16>, vector<80x128xbf16>, vector<16x128xf32> -> vector<16x128xf32>
    %c80 = arith.constant 80 : index
    %c0_3 = arith.constant 0 : index
    %3 = vector.load %arg1[%c80, %c0_3] : memref<320x128xbf16, #tpu.memory_space<vmem>>, vector<80x128xbf16>
    %cst_4 = arith.constant dense<0.000000e+00> : vector<16x128xf32>
    %4 = tpu.matmul %0, %3, %cst_4 {dimension_numbers = #tpu.dot_dimension_numbers<[1], [0], [0], [1], [0, 0, 1, 1], [], []>} : vector<16x80xbf16>, vector<80x128xbf16>, vector<16x128xf32> -> vector<16x128xf32>
    %5 = arith.maximumf %2, %4 : vector<16x128xf32>
    %c160 = arith.constant 160 : index
    %c0_5 = arith.constant 0 : index
    %6 = vector.load %arg1[%c160, %c0_5] : memref<320x128xbf16, #tpu.memory_space<vmem>>, vector<80x128xbf16>
    %cst_6 = arith.constant dense<0.000000e+00> : vector<16x128xf32>
    %7 = tpu.matmul %0, %6, %cst_6 {dimension_numbers = #tpu.dot_dimension_numbers<[1], [0], [0], [1], [0, 0, 1, 1], [], []>} : vector<16x80xbf16>, vector<80x128xbf16>, vector<16x128xf32> -> vector<16x128xf32>
    %8 = arith.maximumf %5, %7 : vector<16x128xf32>
    %c240 = arith.constant 240 : index
    %c0_7 = arith.constant 0 : index
    %9 = vector.load %arg1[%c240, %c0_7] : memref<320x128xbf16, #tpu.memory_space<vmem>>, vector<80x128xbf16>
    %cst_8 = arith.constant dense<0.000000e+00> : vector<16x128xf32>
    %10 = tpu.matmul %0, %9, %cst_8 {dimension_numbers = #tpu.dot_dimension_numbers<[1], [0], [0], [1], [0, 0, 1, 1], [], []>} : vector<16x80xbf16>, vector<80x128xbf16>, vector<16x128xf32> -> vector<16x128xf32>
    %11 = arith.maximumf %8, %10 : vector<16x128xf32>
    %c0_9 = arith.constant 0 : index
    %c0_10 = arith.constant 0 : index
    %12 = vector.load %arg3[%c0_9, %c0_10] : memref<16x1xf32, #tpu.memory_space<vmem>>, vector<16x1xf32>
    %13 = vector.broadcast %12 : vector<16x1xf32> to vector<16x128xf32>
    %14 = arith.addf %11, %13 : vector<16x128xf32>
    %cst_11 = arith.constant 0.00999999977 : f32
    %15 = vector.broadcast %cst_11 : f32 to vector<16x128xf32>
    %16 = arith.mulf %15, %14 : vector<16x128xf32>
    %17 = arith.maximumf %14, %16 : vector<16x128xf32>
    %18 = arith.truncf %17 : vector<16x128xf32> to vector<16x128xbf16>
    %c0_12 = arith.constant 0 : index
    %c0_13 = arith.constant 0 : index
    %19 = vector.load %arg4[%c0_12, %c0_13] : memref<16x128xbf16, #tpu.memory_space<vmem>>, vector<16x128xbf16>
    tpu.vector_store %arg4[%c0_12, %c0_13], %18 {strides = array<i32>} : memref<16x128xbf16, #tpu.memory_space<vmem>>, vector<16x128xbf16>,
    %c128_i32 = arith.constant 128 : i32
    %20 = arith.muli %arg0, %c128_i32 : i32
    %21 = tpu.iota {dimensions = array<i32: 1>} : vector<1x128xi32>
    %22 = vector.broadcast %20 : i32 to vector<1x128xi32>
    %23 = arith.addi %22, %21 : vector<1x128xi32>
    %c192_i32 = arith.constant 192 : i32
    %24 = vector.broadcast %c192_i32 : i32 to vector<1x128xi32>
    %25 = arith.cmpi slt, %23, %24 : vector<1x128xi32>
    %cst_14 = arith.constant 0.000000e+00 : f32
    %26 = vector.shape_cast %25 : vector<1x128xi1> to vector<1x128xi1>
    %27 = vector.broadcast %26 : vector<1x128xi1> to vector<16x128xi1>
    %28 = vector.broadcast %cst_14 : f32 to vector<16x128xf32>
    %29 = arith.select %27, %17, %28 : vector<16x128xi1>, vector<16x128xf32>
    %cst_15 = arith.constant dense<0.000000e+00> : vector<16xf32>
    %30 = vector.multi_reduction <add>, %29, %cst_15 [1] : vector<16x128xf32> to vector<16xf32>
    %31 = vector.shape_cast %30 : vector<16xf32> to vector<16x1xf32>
    %c0_16 = arith.constant 0 : index
    %c0_17 = arith.constant 0 : index
    %c0_18 = arith.constant 0 : index
    %32 = vector.load %arg5[%c0_16, %c0_17, %c0_18] : memref<1x16x2xf32, #tpu.memory_space<vmem>>, vector<1x16x1xf32>
    %33 = vector.shape_cast %32 : vector<1x16x1xf32> to vector<16x1xf32>
    %34 = vector.shape_cast %31 : vector<16x1xf32> to vector<1x16x1xf32>
    tpu.vector_store %arg5[%c0_16, %c0_17, %c0_18], %34 {strides = array<i32>} : memref<1x16x2xf32, #tpu.memory_space<vmem>>, vector<1x16x1xf32>,
    %35 = arith.mulf %29, %29 : vector<16x128xf32>
    %cst_19 = arith.constant dense<0.000000e+00> : vector<16xf32>
    %36 = vector.multi_reduction <add>, %35, %cst_19 [1] : vector<16x128xf32> to vector<16xf32>
    %37 = vector.shape_cast %36 : vector<16xf32> to vector<16x1xf32>
    %c0_20 = arith.constant 0 : index
    %c0_21 = arith.constant 0 : index
    %c1 = arith.constant 1 : index
    %38 = vector.load %arg5[%c0_20, %c0_21, %c1] : memref<1x16x2xf32, #tpu.memory_space<vmem>>, vector<1x16x1xf32>
    %39 = vector.shape_cast %38 : vector<1x16x1xf32> to vector<16x1xf32>
    %40 = vector.shape_cast %37 : vector<16x1xf32> to vector<1x16x1xf32>
    tpu.vector_store %arg5[%c0_20, %c0_21, %c1], %40 {strides = array<i32>} : memref<1x16x2xf32, #tpu.memory_space<vmem>>, vector<1x16x1xf32>,
    return
  }
  func.func @transform_0(%arg0: i32) -> (i32, i32) {
    %c0_i32 = arith.constant 0 : i32
    %c0_i32_0 = arith.constant 0 : i32
    return %c0_i32, %arg0 : i32, i32
  }
  func.func @transform_1(%arg0: i32) -> (i32, i32) {
    %c0_i32 = arith.constant 0 : i32
    %c0_i32_0 = arith.constant 0 : i32
    %c0_i32_1 = arith.constant 0 : i32
    return %c0_i32, %c0_i32_0 : i32, i32
  }
  func.func @transform_2(%arg0: i32) -> (i32, i32) {
    %c0_i32 = arith.constant 0 : i32
    %c0_i32_0 = arith.constant 0 : i32
    %c0_i32_1 = arith.constant 0 : i32
    return %c0_i32, %c0_i32_0 : i32, i32
  }
  func.func @transform_3(%arg0: i32) -> (i32, i32) {
    %c0_i32 = arith.constant 0 : i32
    %c0_i32_0 = arith.constant 0 : i32
    return %c0_i32, %arg0 : i32, i32
  }
  func.func @transform_4(%arg0: i32) -> (i32, i32, i32) {
    %c0_i32 = arith.constant 0 : i32
    %c0_i32_0 = arith.constant 0 : i32
    %c0_i32_1 = arith.constant 0 : i32
    return %arg0, %c0_i32, %c0_i32_0 : i32, i32, i32
  }
}

module attributes {stable_mosaic.version = 11 : i64} {
  func.func @_bn_apply_kernel(%arg0: i32, %arg1: memref<16x128xbf16, #tpu.memory_space<vmem>>, %arg2: memref<16x1xf32, #tpu.memory_space<vmem>>, %arg3: memref<16x1xf32, #tpu.memory_space<vmem>>, %arg4: memref<16x128xf32, #tpu.memory_space<vmem>>) attributes {dimension_semantics = [#tpu.dimension_semantics<parallel>], iteration_bounds = array<i64: 2>, scalar_prefetch = 0 : i64, scratch_operands = 0 : i64, tpu.core_type = #tpu.core_type<tc>, window_params = [{transform_indices = @transform_0, window_bounds = array<i64: 16, 128>}, {pipeline_mode = #tpu.pipeline_mode<synchronous>, transform_indices = @transform_1, window_bounds = array<i64: 16, 1>}, {pipeline_mode = #tpu.pipeline_mode<synchronous>, transform_indices = @transform_2, window_bounds = array<i64: 16, 1>}, {transform_indices = @transform_3, window_bounds = array<i64: 16, 128>}]} {
    %c0 = arith.constant 0 : index
    %c0_0 = arith.constant 0 : index
    %0 = vector.load %arg1[%c0, %c0_0] : memref<16x128xbf16, #tpu.memory_space<vmem>>, vector<16x128xbf16>
    %1 = arith.extf %0 : vector<16x128xbf16> to vector<16x128xf32>
    %c0_1 = arith.constant 0 : index
    %c0_2 = arith.constant 0 : index
    %2 = vector.load %arg2[%c0_1, %c0_2] : memref<16x1xf32, #tpu.memory_space<vmem>>, vector<16x1xf32>
    %3 = vector.broadcast %2 : vector<16x1xf32> to vector<16x128xf32>
    %4 = arith.mulf %1, %3 : vector<16x128xf32>
    %c0_3 = arith.constant 0 : index
    %c0_4 = arith.constant 0 : index
    %5 = vector.load %arg3[%c0_3, %c0_4] : memref<16x1xf32, #tpu.memory_space<vmem>>, vector<16x1xf32>
    %6 = vector.broadcast %5 : vector<16x1xf32> to vector<16x128xf32>
    %7 = arith.addf %4, %6 : vector<16x128xf32>
    %c0_5 = arith.constant 0 : index
    %c0_6 = arith.constant 0 : index
    %8 = vector.load %arg4[%c0_5, %c0_6] : memref<16x128xf32, #tpu.memory_space<vmem>>, vector<16x128xf32>
    tpu.vector_store %arg4[%c0_5, %c0_6], %7 {strides = array<i32>} : memref<16x128xf32, #tpu.memory_space<vmem>>, vector<16x128xf32>,
    return
  }
  func.func @transform_0(%arg0: i32) -> (i32, i32) {
    %c0_i32 = arith.constant 0 : i32
    %c0_i32_0 = arith.constant 0 : i32
    return %c0_i32, %arg0 : i32, i32
  }
  func.func @transform_1(%arg0: i32) -> (i32, i32) {
    %c0_i32 = arith.constant 0 : i32
    %c0_i32_0 = arith.constant 0 : i32
    %c0_i32_1 = arith.constant 0 : i32
    return %c0_i32, %c0_i32_0 : i32, i32
  }
  func.func @transform_2(%arg0: i32) -> (i32, i32) {
    %c0_i32 = arith.constant 0 : i32
    %c0_i32_0 = arith.constant 0 : i32
    %c0_i32_1 = arith.constant 0 : i32
    return %c0_i32, %c0_i32_0 : i32, i32
  }
  func.func @transform_3(%arg0: i32) -> (i32, i32) {
    %c0_i32 = arith.constant 0 : i32
    %c0_i32_0 = arith.constant 0 : i32
    return %c0_i32, %arg0 : i32, i32
  }
}

</mosaic_0001>

<llo_original>
// kernel: _lambda_.3
$region0: #{_lambda_.3}
  #allocation0 [shape = 'u32[]', space=smem, size = 0x4, offset = 0x4, fixed_abs, tag = 'smem constant byte address 0x4 - core index']
  #allocation1 [shape = 'u32[144,128]{1,0:T(1,128)}', space=vmem, size = 0x12000, scoped, tag = 'internal scratch']
  %s0 = inlined_call_operand.vmem [shape: bf16[128,768], index: 0, kind: input, shape index: {}]
  %s1 = inlined_call_operand.vmem [shape: bf16[16,32], index: 1, kind: input, shape index: {}]
  %s2 = inlined_call_operand.vmem [shape: f32[16,1], index: 2, kind: input, shape index: {}]
  %s3 = inlined_call_operand.vmem [shape: bf16[16,768], index: 3, kind: output, shape index: {0}]
  %s4 = inlined_call_operand.vmem [shape: f32[2,16,2], index: 4, kind: output, shape index: {1}]
  %5 = xla_tuple %s3, %s4
  %s6 = sld [smem:[#allocation0]]
  $region101: #{_lambda_.3} parent=0
    _
  %s8 = ssub.s32 1, %s6
  %s9 = scalar_select 0, %s8, %s6
  $region1: #{_lambda_.3} parent=0
    #allocation2 [shape = 'u8[196608]{0}', space=vmem, size = 0x30000, scoped, tag = 'input window, operand 0']
    #allocation3 [shape = 'u8[24576]{0}', space=vmem, size = 0x6000, scoped, tag = 'output window, operand 0']
    loop: start=0, step=1, limit=4
    $region2: #{_lambda_.3} parent=1 // loop_pre_header
      _
    $region3: #{_lambda_.3} parent=1 // loop_header
      %s11 = sphi 0, %s15
      %p12 = scmp.ge.s32.totalorder %s11, 4
      %s21 = sphi 0, %s23
      %s24 = sphi 0, %s21
      %s25 = sphi 0, %s24
      %s41 = sphi 0, %s25
      %s45 = sphi 0, %s45
      %s47 = sphi 0, %s45
      %s48 = sphi 0, %s47
      %s62 = sphi 0, %s48
      %s66 = sphi 0, %s66
      %s68 = sphi 0, %s66
      %s69 = sphi 0, %s68
      %s83 = sphi 0, %s69
      %s89 = sphi 0, %s91
      %s92 = sphi 0, %s89
      %s93 = sphi 0, %s92
      %s109 = sphi 0, %s93
      %s115 = sphi 0, %s117
      %s118 = sphi 0, %s115
      %s119 = sphi 0, %s118
      %s135 = sphi 0, %s119
    $region4: #{_lambda_.3} parent=1 // loop_header_branch
      %14 = sbr.rel (%p12) target = $region8
    $region5: #{_lambda_.3} parent=1 // loop_body
      %s16 = ssub.s32 %s11, 1
      %s17 = ssub.s32 %s11, 2
      %s18 = sadd.s32 %s11, 1
      %s19 = ssub.s32 %s11, %s18
      %p20 = scmp.eq.s32.totalorder %s19, 0
      %s22 = sadd.s32 %s21, 1
      %s23 = scalar_select %p20, %s21, %s22
      %p26 = pneg %p20
      %p27 = scmp.eq.s32.totalorder %s11, 1
      %p28 = por %p26, %p27
      %p29 = scmp.ne.s32.totalorder %s21, %s24
      %p30 = scmp.eq.s32.totalorder %s11, 0
      %p31 = por %p29, %p30
      %p32 = scmp.ne.s32.totalorder %s21, %s24
      %p33 = scmp.eq.s32.totalorder %s16, 1
      %p34 = por %p32, %p33
      %p35 = scmp.ne.s32.totalorder %s24, %s25
      %p36 = scmp.eq.s32.totalorder %s16, 0
      %p37 = por %p35, %p36
      %p38 = scmp.ne.s32.totalorder %s24, %s25
      %p39 = scmp.eq.s32.totalorder %s17, 1
      %p40 = por %p38, %p39
      %p42 = scmp.ne.s32.totalorder %s25, %s41
      %p43 = scmp.eq.s32.totalorder %s17, 0
      %p44 = por %p42, %p43
      %s46 = sadd.s32 %s45, 1
      %p49 = scmp.eq.s32.totalorder %s11, 1
      %p50 = scmp.ne.s32.totalorder %s45, %s47
      %p51 = scmp.eq.s32.totalorder %s11, 0
      %p52 = por %p50, %p51
      %p53 = scmp.ne.s32.totalorder %s45, %s47
      %p54 = scmp.eq.s32.totalorder %s16, 1
      %p55 = por %p53, %p54
      %p56 = scmp.ne.s32.totalorder %s47, %s48
      %p57 = scmp.eq.s32.totalorder %s16, 0
      %p58 = por %p56, %p57
      %p59 = scmp.ne.s32.totalorder %s47, %s48
      %p60 = scmp.eq.s32.totalorder %s17, 1
      %p61 = por %p59, %p60
      %p63 = scmp.ne.s32.totalorder %s48, %s62
      %p64 = scmp.eq.s32.totalorder %s17, 0
      %p65 = por %p63, %p64
      %s67 = sadd.s32 %s66, 1
      %p70 = scmp.eq.s32.totalorder %s11, 1
      %p71 = scmp.ne.s32.totalorder %s66, %s68
      %p72 = scmp.eq.s32.totalorder %s11, 0
      %p73 = por %p71, %p72
      %p74 = scmp.ne.s32.totalorder %s66, %s68
      %p75 = scmp.eq.s32.totalorder %s16, 1
      %p76 = por %p74, %p75
      %p77 = scmp.ne.s32.totalorder %s68, %s69
      %p78 = scmp.eq.s32.totalorder %s16, 0
      %p79 = por %p77, %p78
      %p80 = scmp.ne.s32.totalorder %s68, %s69
      %p81 = scmp.eq.s32.totalorder %s17, 1
      %p82 = por %p80, %p81
      %p84 = scmp.ne.s32.totalorder %s69, %s83
      %p85 = scmp.eq.s32.totalorder %s17, 0
      %p86 = por %p84, %p85
      %s87 = ssub.s32 %s11, %s18
      %p88 = scmp.eq.s32.totalorder %s87, 0
      %s90 = sadd.s32 %s89, 1
      %s91 = scalar_select %p88, %s89, %s90
      %p94 = pneg %p88
      %p95 = scmp.eq.s32.totalorder %s11, 1
      %p96 = por %p94, %p95
      %p97 = scmp.ne.s32.totalorder %s89, %s92
      %p98 = scmp.eq.s32.totalorder %s11, 0
      %p99 = por %p97, %p98
      %p100 = scmp.ne.s32.totalorder %s89, %s92
      %p101 = scmp.eq.s32.totalorder %s16, 1
      %p102 = por %p100, %p101
      %p103 = scmp.ne.s32.totalorder %s92, %s93
      %p104 = scmp.eq.s32.totalorder %s16, 0
      %p105 = por %p103, %p104
      %p106 = scmp.ne.s32.totalorder %s92, %s93
      %p107 = scmp.eq.s32.totalorder %s17, 1
      %p108 = por %p106, %p107
      %p110 = scmp.ne.s32.totalorder %s93, %s109
      %p111 = scmp.eq.s32.totalorder %s17, 0
      %p112 = por %p110, %p111
      %s113 = ssub.s32 %s11, %s18
      %p114 = scmp.eq.s32.totalorder %s113, 0
      %s116 = sadd.s32 %s115, 1
      %s117 = scalar_select %p114, %s115, %s116
      %p120 = pneg %p114
      %p121 = scmp.eq.s32.totalorder %s11, 1
      %p122 = por %p120, %p121
      %p123 = scmp.ne.s32.totalorder %s115, %s118
      %p124 = scmp.eq.s32.totalorder %s11, 0
      %p125 = por %p123, %p124
      %p126 = scmp.ne.s32.totalorder %s115, %s118
      %p127 = scmp.eq.s32.totalorder %s16, 1
      %p128 = por %p126, %p127
      %p129 = scmp.ne.s32.totalorder %s118, %s119
      %p130 = scmp.eq.s32.totalorder %s16, 0
      %p131 = por %p129, %p130
      %p132 = scmp.ne.s32.totalorder %s118, %s119
      %p133 = scmp.eq.s32.totalorder %s17, 1
      %p134 = por %p132, %p133
      %p136 = scmp.ne.s32.totalorder %s119, %s135
      %p137 = scmp.eq.s32.totalorder %s17, 0
      %p138 = por %p136, %p137
      %p139 = scmp.le.s32.totalorder 1, %s11
      %p140 = scmp.lt.s32.totalorder %s11, 3
      %p141 = pnand %p139, %p140
      %p142 = pneg %p141
      // Predicated region
      $region9: #{_lambda_.3} parent=5 // pred_check
        _
      $region10: #{_lambda_.3} parent=5 // pred_check_branch
        %144 = sbr.rel (%p141) target = $region12
      $region11: #{_lambda_.3} parent=5 // pred_region
        %s145 = ssub.s32 %s11, 1
        // Predicated region
        $region13: #{_lambda_.3} parent=11 // pred_check
          %p146 = pneg %p58
        $region14: #{_lambda_.3} parent=11 // pred_check_branch
          %148 = sbr.rel (%p146) target = $region16
        $region15: #{_lambda_.3} parent=11 // pred_region
          _
        $region16: #{_lambda_.3} parent=11 // pred_fallthru
          _
        // Predicated region
        $region17: #{_lambda_.3} parent=11 // pred_check
          %p149 = pneg %p79
        $region18: #{_lambda_.3} parent=11 // pred_check_branch
          %151 = sbr.rel (%p149) target = $region20
        $region19: #{_lambda_.3} parent=11 // pred_region
          _
        $region20: #{_lambda_.3} parent=11 // pred_fallthru
          _
      $region12: #{_lambda_.3} parent=5 // pred_fallthru
        _
      %p152 = scmp.lt.s32.totalorder %s11, 2
      // Predicated region
      $region21: #{_lambda_.3} parent=5 // pred_check
        %p153 = pneg %p152
      $region22: #{_lambda_.3} parent=5 // pred_check_branch
        %155 = sbr.rel (%p153) target = $region24
      $region23: #{_lambda_.3} parent=5 // pred_region
        // Predicated region
        $region25: #{_lambda_.3} parent=23 // pred_check
          %p156 = pneg %p31
        $region26: #{_lambda_.3} parent=23 // pred_check_branch
          %158 = sbr.rel (%p156) target = $region28
        $region27: #{_lambda_.3} parent=23 // pred_region
          %s159 = sand.u32 %s21, 1
          %s160 = sand.u32 %s21, 1
          %s161 = smul.addr %s160, 192
          %s162 = scalar_lea.vmem [#allocation2], %s161
          %s163 = smul.u32 3, %s11
          %s164 = smul.addr %s163, 4
          %s165 = scalar_lea.vmem %s0, %s164
          // Predicated region
          $region29: #{_lambda_.3} parent=27 // pred_check
            _
          $region30: #{_lambda_.3} parent=27 // pred_check_branch
            %167 = sbr.rel (0) target = $region32
          $region31: #{_lambda_.3} parent=27 // pred_region
            // Predicated region
            $region33: #{_lambda_.3} parent=31 // pred_check
              _
            $region34: #{_lambda_.3} parent=31 // pred_check_branch
              %169 = sbr.rel (0) target = $region36
            $region35: #{_lambda_.3} parent=31 // pred_region
              %s170 = scalar_lea.vmem %s165, 8
              %s171 = scalar_lea.vmem %s162, 8 [#allocation2]
              loop: start=0, step=1, limit=1
              $region37: #{_lambda_.3} parent=35 // loop_pre_header
                _
              $region38: #{_lambda_.3} parent=35 // loop_header
                %s173 = sphi 0, %s177
                %p174 = scmp.ge.s32.totalorder %s173, 1
                %s178 = sphi %s165, %s165
                %s179 = sphi %s162, %s162
              $region39: #{_lambda_.3} parent=35 // loop_header_branch
                %176 = sbr.rel (%p174) target = $region43
              $region40: #{_lambda_.3} parent=35 // loop_body
                %v180 = vld [vmem:[%s178] sm:$0xff]
                %181 = vst [vmem:[%s179] sm:$0xff] %v180
                %v182 = vld [vmem:[%s178 + $0x18] sm:$0xff]
                %183 = vst [vmem:[%s179 + $0xc] sm:$0xff] %v182
                %v184 = vld [vmem:[%s178 + $0x30] sm:$0xff]
                %185 = vst [vmem:[%s179 + $0x18] sm:$0xff] %v184
                %v186 = vld [vmem:[%s178 + $0x48] sm:$0xff]
                %187 = vst [vmem:[%s179 + $0x24] sm:$0xff] %v186
                %v188 = vld [vmem:[%s178 + $0x60] sm:$0xff]
                %189 = vst [vmem:[%s179 + $0x30] sm:$0xff] %v188
                %v190 = vld [vmem:[%s178 + $0x78] sm:$0xff]
                %191 = vst [vmem:[%s179 + $0x3c] sm:$0xff] %v190
                %v192 = vld [vmem:[%s178 + $0x90] sm:$0xff]
                %193 = vst [vmem:[%s179 + $0x48] sm:$0xff] %v192
                %v194 = vld [vmem:[%s178 + $0xa8] sm:$0xff]
                %195 = vst [vmem:[%s179 + $0x54] sm:$0xff] %v194
                %v196 = vld [vmem:[%s178 + $0xc0] sm:$0xff]
                %197 = vst [vmem:[%s179 + $0x60] sm:$0xff] %v196
                %v198 = vld [vmem:[%s178 + $0xd8] sm:$0xff]
                %199 = vst [vmem:[%s179 + $0x6c] sm:$0xff] %v198
                %v200 = vld [vmem:[%s178 + $0xf0] sm:$0xff]
                %201 = vst [vmem:[%s179 + $0x78] sm:$0xff] %v200
                %v202 = vld [vmem:[%s178 + $0x108] sm:$0xff]
                %203 = vst [vmem:[%s179 + $0x84] sm:$0xff] %v202
                %v204 = vld [vmem:[%s178 + $0x120] sm:$0xff]
                %205 = vst [vmem:[%s179 + $0x90] sm:$0xff] %v204
                %v206 = vld [vmem:[%s178 + $0x138] sm:$0xff]
                %207 = vst [vmem:[%s179 + $0x9c] sm:$0xff] %v206
                %v208 = vld [vmem:[%s178 + $0x150] sm:$0xff]
                %209 = vst [vmem:[%s179 + $0xa8] sm:$0xff] %v208
                %v210 = vld [vmem:[%s178 + $0x168] sm:$0xff]
                %211 = vst [vmem:[%s179 + $0xb4] sm:$0xff] %v210
              $region41: #{_lambda_.3} parent=35 // loop_footer
                %s177 = sadd.s32 1, %s173
              $region42: #{_lambda_.3} parent=35 // loop_footer_branch
                %172 = sbr.rel target = $region38
              $region43: #{_lambda_.3} parent=35 // loop_exit
                _
              loop: start=0, step=1, limit=1
              $region44: #{_lambda_.3} parent=35 // loop_pre_header
                _
              $region45: #{_lambda_.3} parent=35 // loop_header
                %s214 = sphi 0, %s218
                %p215 = scmp.ge.s32.totalorder %s214, 1
                %s219 = sphi %s170, %s170
                %s220 = sphi %s171, %s171
              $region46: #{_lambda_.3} parent=35 // loop_header_branch
                %217 = sbr.rel (%p215) target = $region50
              $region47: #{_lambda_.3} parent=35 // loop_body
                %v221 = vld [vmem:[%s219] sm:$0xf]
                %222 = vst [vmem:[%s220] sm:$0xf] %v221
                %v223 = vld [vmem:[%s219 + $0x18] sm:$0xf]
                %224 = vst [vmem:[%s220 + $0xc] sm:$0xf] %v223
                %v225 = vld [vmem:[%s219 + $0x30] sm:$0xf]
                %226 = vst [vmem:[%s220 + $0x18] sm:$0xf] %v225
                %v227 = vld [vmem:[%s219 + $0x48] sm:$0xf]
                %228 = vst [vmem:[%s220 + $0x24] sm:$0xf] %v227
                %v229 = vld [vmem:[%s219 + $0x60] sm:$0xf]
                %230 = vst [vmem:[%s220 + $0x30] sm:$0xf] %v229
                %v231 = vld [vmem:[%s219 + $0x78] sm:$0xf]
                %232 = vst [vmem:[%s220 + $0x3c] sm:$0xf] %v231
                %v233 = vld [vmem:[%s219 + $0x90] sm:$0xf]
                %234 = vst [vmem:[%s220 + $0x48] sm:$0xf] %v233
                %v235 = vld [vmem:[%s219 + $0xa8] sm:$0xf]
                %236 = vst [vmem:[%s220 + $0x54] sm:$0xf] %v235
                %v237 = vld [vmem:[%s219 + $0xc0] sm:$0xf]
                %238 = vst [vmem:[%s220 + $0x60] sm:$0xf] %v237
                %v239 = vld [vmem:[%s219 + $0xd8] sm:$0xf]
                %240 = vst [vmem:[%s220 + $0x6c] sm:$0xf] %v239
                %v241 = vld [vmem:[%s219 + $0xf0] sm:$0xf]
                %242 = vst [vmem:[%s220 + $0x78] sm:$0xf] %v241
                %v243 = vld [vmem:[%s219 + $0x108] sm:$0xf]
                %244 = vst [vmem:[%s220 + $0x84] sm:$0xf] %v243
                %v245 = vld [vmem:[%s219 + $0x120] sm:$0xf]
                %246 = vst [vmem:[%s220 + $0x90] sm:$0xf] %v245
                %v247 = vld [vmem:[%s219 + $0x138] sm:$0xf]
                %248 = vst [vmem:[%s220 + $0x9c] sm:$0xf] %v247
                %v249 = vld [vmem:[%s219 + $0x150] sm:$0xf]
                %250 = vst [vmem:[%s220 + $0xa8] sm:$0xf] %v249
                %v251 = vld [vmem:[%s219 + $0x168] sm:$0xf]
                %252 = vst [vmem:[%s220 + $0xb4] sm:$0xf] %v251
              $region48: #{_lambda_.3} parent=35 // loop_footer
                %s218 = sadd.s32 1, %s214
              $region49: #{_lambda_.3} parent=35 // loop_footer_branch
                %213 = sbr.rel target = $region45
              $region50: #{_lambda_.3} parent=35 // loop_exit
                _
            $region36: #{_lambda_.3} parent=31 // pred_fallthru
              _
          $region32: #{_lambda_.3} parent=27 // pred_fallthru
            _
          %253 = vnop
        $region28: #{_lambda_.3} parent=23 // pred_fallthru
          _
      $region24: #{_lambda_.3} parent=5 // pred_fallthru
        _
      %p254 = scmp.le.s32.totalorder 1, %s11
      %p255 = scmp.lt.s32.totalorder %s11, 3
      %p256 = pnand %p254, %p255
      %p257 = pneg %p256
      // Predicated region
      $region51: #{_lambda_.3} parent=5 // pred_check
        _
      $region52: #{_lambda_.3} parent=5 // pred_check_branch
        %259 = sbr.rel (%p256) target = $region54
      $region53: #{_lambda_.3} parent=5 // pred_region
        %s260 = ssub.s32 %s11, 1
        %s261 = sand.u32 %s24, 1
        %s262 = sand.u32 %s24, 1
        %s263 = smul.addr %s262, 192
        %s264 = scalar_lea.vmem [#allocation2], %s263
        // Predicated region
        $region55: #{_lambda_.3} parent=53 // pred_check
          %p265 = pneg %p37
        $region56: #{_lambda_.3} parent=53 // pred_check_branch
          %267 = sbr.rel (%p265) target = $region58
        $region57: #{_lambda_.3} parent=53 // pred_region
          _
        $region58: #{_lambda_.3} parent=53 // pred_fallthru
          _
        %s268 = sand.u32 %s24, 1
        %s269 = sand.u32 %s24, 1
        %s270 = smul.addr %s269, 192
        %s271 = scalar_lea.vmem [#allocation2], %s270
        %p272 = pneg %p37
        %p273 = pneg %p34
        %p274 = pneg %p58
        %p275 = pneg %p55
        %p276 = pneg %p79
        %p277 = pneg %p76
        %p278 = pneg %p105
        %p279 = pneg %p102
        %s280 = sand.u32 %s92, 1
        %s281 = sand.u32 %s92, 1
        %s282 = smul.addr %s281, 24
        %s283 = scalar_lea.vmem [#allocation3], %s282
        %p284 = pneg %p131
        %p285 = pneg %p128
        %p286 = scmp.lt.s32.totalorder %s16, 1
        %s287 = scalar_select %p286, %s16, 1
        %s288 = smul.addr %s287, 2
        %s289 = smul.addr %s288, 8
        %s290 = scalar_lea.vmem %s4, %s289
        %s291 = smul.u32 3, %s16
        %s292 = smul.u32 3, %s16
        %p293 = scmp.lt.s32.totalorder %s16, 1
        %s294 = scalar_select %p293, %s16, 1
        %s295 = smul.addr %s294, 2
        %s296 = smul.addr %s295, 8
        %s297 = scalar_lea.vmem %s4, %s296
        %v299 = vld [vmem:[%s1] sm:$0xf]
        %v300 = vld [vmem:[%s1 + $0x4] sm:$0xf]
        %v301 = vld [vmem:[%s264] sm:$0xff]
        %v302 = vld [vmem:[%s264 + $0x8] sm:$0xf]
        %v303 = vld [vmem:[%s264 + $0xc] sm:$0xff]
        %v304 = vld [vmem:[%s264 + $0x14] sm:$0xf]
        %v305 = vld [vmem:[%s264 + $0x18] sm:$0xff]
        %v306 = vld [vmem:[%s264 + $0x20] sm:$0xf]
        %v307 = vld [vmem:[%s264 + $0x24] sm:$0xff]
        %v308 = vld [vmem:[%s264 + $0x2c] sm:$0xf]
        %v311 = vunpack.c.l.b16 %v299
        %v312 = vunpack.c.l.b16 %v300
        %v313 = vpack.c.b16 %v312, %v311
        %v322 = vunpack.c.l.b16 %v301
        %v323 = vunpack.c.h.b16 %v301
        %v324 = vunpack.c.l.b16 %v302
        %v325 = vunpack.c.l.b16 %v303
        %v326 = vunpack.c.h.b16 %v303
        %v327 = vunpack.c.l.b16 %v304
        %v328 = vunpack.c.l.b16 %v305
        %v329 = vunpack.c.h.b16 %v305
        %v330 = vunpack.c.l.b16 %v306
        %v331 = vunpack.c.l.b16 %v307
        %v332 = vunpack.c.h.b16 %v307
        %v333 = vunpack.c.l.b16 %v308
        %v334 = vpack.c.b16 %v325, %v322
        %v335 = vpack.c.b16 %v326, %v323
        %v336 = vpack.c.b16 %v327, %v324
        %v337 = vpack.c.b16 %v331, %v328
        %v338 = vpack.c.b16 %v332, %v329
        %v339 = vpack.c.b16 %v333, %v330
        %vm346 = vcmask 261120
        %v348 = vsel %vm346, %v313, 0
        %350 = vmatprep.subr.bf16.mxu0 %v335
        %351 = vmatpush1.bf16.msra.mxu0 %v334
        %352 = vmatprep.subr.bf16.mxu0 %v338
        %353 = vmatpush1.bf16.msra.mxu0 %v337
        %354 = vmatprep.subr.bf16.mxu0 0
        %355 = vmatpush1.bf16.msra.mxu0 0
        %356 = vmatprep.subr.bf16.mxu0 0
        %357 = vmatpush1.bf16.msra.mxu0 0
        %358 = vmatprep.subr.bf16.mxu0 0
        %359 = vmatpush1.bf16.msra.mxu0 0
        %360 = vmatprep.subr.bf16.mxu0 0
        %361 = vmatpush1.bf16.msra.mxu0 0
        %362 = vmatprep.subr.bf16.mxu0 0
        %363 = vmatpush1.bf16.msra.mxu0 0
        %364 = vmatprep.subr.bf16.mxu0 0
        %365 = vmatpush1.bf16.msra.mxu0 0
        %366 = vmatprep.subr.bf16.mxu0 0
        %367 = vmatpush1.bf16.msra.mxu0 0
        %368 = vmatprep.subr.bf16.mxu0 0
        %369 = vmatpush1.bf16.msra.mxu0 0
        %370 = vmatprep.subr.bf16.mxu0 0
        %371 = vmatpush1.bf16.msra.mxu0 0
        %372 = vmatprep.subr.bf16.mxu0 0
        %373 = vmatpush1.bf16.msra.mxu0 0
        %374 = vmatprep.subr.bf16.mxu0 0
        %375 = vmatpush1.bf16.msra.mxu0 0
        %376 = vmatprep.subr.bf16.mxu0 0
        %377 = vmatpush1.bf16.msra.mxu0 0
        %378 = vmatprep.subr.bf16.mxu0 0
        %379 = vmatpush1.bf16.msra.mxu0 0
        %380 = vmatprep.subr.bf16.mxu0 0
        %381 = vmatpush1.bf16.msra.mxu0 0
        %382 = vmatprep.mubr.bf16.mxu0 0
        %383 = vmatmul.mubr.bf16.gmra.mrb[0].mxu0 %v348
        %v384 = vpop.f32.mrb[0].mxu0
        %v385 = vadd.f32 0.0, %v384
        %v386 = vpop.f32.mrb[0].mxu0
        %v387 = vadd.f32 0.0, %v386
        %v388 = vpop.f32.mrb[0].mxu0
        %v389 = vadd.f32 0.0, %v388
        %v390 = vpop.f32.mrb[0].mxu0
        %v391 = vadd.f32 0.0, %v390
        %392 = vdwg.mxu0
        %393 = vmatprep.subr.bf16.mxu0 0
        %394 = vmatpush1.bf16.msra.mxu0 %v336
        %395 = vmatprep.subr.bf16.mxu0 0
        %396 = vmatpush1.bf16.msra.mxu0 %v339
        %397 = vmatprep.subr.bf16.mxu0 0
        %398 = vmatpush1.bf16.msra.mxu0 0
        %399 = vmatprep.subr.bf16.mxu0 0
        %400 = vmatpush1.bf16.msra.mxu0 0
        %401 = vmatprep.subr.bf16.mxu0 0
        %402 = vmatpush1.bf16.msra.mxu0 0
        %403 = vmatprep.subr.bf16.mxu0 0
        %404 = vmatpush1.bf16.msra.mxu0 0
        %405 = vmatprep.subr.bf16.mxu0 0
        %406 = vmatpush1.bf16.msra.mxu0 0
        %407 = vmatprep.subr.bf16.mxu0 0
        %408 = vmatpush1.bf16.msra.mxu0 0
        %409 = vmatprep.subr.bf16.mxu0 0
        %410 = vmatpush1.bf16.msra.mxu0 0
        %411 = vmatprep.subr.bf16.mxu0 0
        %412 = vmatpush1.bf16.msra.mxu0 0
        %413 = vmatprep.subr.bf16.mxu0 0
        %414 = vmatpush1.bf16.msra.mxu0 0
        %415 = vmatprep.subr.bf16.mxu0 0
        %416 = vmatpush1.bf16.msra.mxu0 0
        %417 = vmatprep.subr.bf16.mxu0 0
        %418 = vmatpush1.bf16.msra.mxu0 0
        %419 = vmatprep.subr.bf16.mxu0 0
        %420 = vmatpush1.bf16.msra.mxu0 0
        %421 = vmatprep.subr.bf16.mxu0 0
        %422 = vmatpush1.bf16.msra.mxu0 0
        %423 = vmatprep.subr.bf16.mxu0 0
        %424 = vmatpush1.bf16.msra.mxu0 0
        %425 = vmatprep.mubr.bf16.mxu0 0
        %426 = vmatmul.mubr.bf16.gmra.mrb[0].mxu0 %v348
        %v427 = vpop.f32.mrb[0].mxu0
        %v428 = vadd.f32 0.0, %v427
        %v429 = vpop.f32.mrb[0].mxu0
        %v430 = vpop.f32.mrb[0].mxu0
        %v431 = vadd.f32 0.0, %v430
        %v432 = vpop.f32.mrb[0].mxu0
        %433 = vdwg.mxu0
        %v434 = vld [vmem:[%s264 + $0x30] sm:$0xff]
        %v435 = vld [vmem:[%s264 + $0x38] sm:$0xf]
        %v436 = vld [vmem:[%s264 + $0x3c] sm:$0xff]
        %v437 = vld [vmem:[%s264 + $0x44] sm:$0xf]
        %v438 = vld [vmem:[%s264 + $0x48] sm:$0xff]
        %v439 = vld [vmem:[%s264 + $0x50] sm:$0xf]
        %v440 = vld [vmem:[%s264 + $0x54] sm:$0xff]
        %v441 = vld [vmem:[%s264 + $0x5c] sm:$0xf]
        %v450 = vunpack.c.l.b16 %v434
        %v451 = vunpack.c.h.b16 %v434
        %v452 = vunpack.c.l.b16 %v435
        %v453 = vunpack.c.l.b16 %v436
        %v454 = vunpack.c.h.b16 %v436
        %v455 = vunpack.c.l.b16 %v437
        %v456 = vunpack.c.l.b16 %v438
        %v457 = vunpack.c.h.b16 %v438
        %v458 = vunpack.c.l.b16 %v439
        %v459 = vunpack.c.l.b16 %v440
        %v460 = vunpack.c.h.b16 %v440
        %v461 = vunpack.c.l.b16 %v441
        %v462 = vpack.c.b16 %v453, %v450
        %v463 = vpack.c.b16 %v454, %v451
        %v464 = vpack.c.b16 %v455, %v452
        %v465 = vpack.c.b16 %v459, %v456
        %v466 = vpack.c.b16 %v460, %v457
        %v467 = vpack.c.b16 %v461, %v458
        %474 = vmatprep.subr.bf16.mxu0 %v463
        %475 = vmatpush1.bf16.msra.mxu0 %v462
        %476 = vmatprep.subr.bf16.mxu0 %v466
        %477 = vmatpush1.bf16.msra.mxu0 %v465
        %478 = vmatprep.subr.bf16.mxu0 0
        %479 = vmatpush1.bf16.msra.mxu0 0
        %480 = vmatprep.subr.bf16.mxu0 0
        %481 = vmatpush1.bf16.msra.mxu0 0
        %482 = vmatprep.subr.bf16.mxu0 0
        %483 = vmatpush1.bf16.msra.mxu0 0
        %484 = vmatprep.subr.bf16.mxu0 0
        %485 = vmatpush1.bf16.msra.mxu0 0
        %486 = vmatprep.subr.bf16.mxu0 0
        %487 = vmatpush1.bf16.msra.mxu0 0
        %488 = vmatprep.subr.bf16.mxu0 0
        %489 = vmatpush1.bf16.msra.mxu0 0
        %490 = vmatprep.subr.bf16.mxu0 0
        %491 = vmatpush1.bf16.msra.mxu0 0
        %492 = vmatprep.subr.bf16.mxu0 0
        %493 = vmatpush1.bf16.msra.mxu0 0
        %494 = vmatprep.subr.bf16.mxu0 0
        %495 = vmatpush1.bf16.msra.mxu0 0
        %496 = vmatprep.subr.bf16.mxu0 0
        %497 = vmatpush1.bf16.msra.mxu0 0
        %498 = vmatprep.subr.bf16.mxu0 0
        %499 = vmatpush1.bf16.msra.mxu0 0
        %500 = vmatprep.subr.bf16.mxu0 0
        %501 = vmatpush1.bf16.msra.mxu0 0
        %502 = vmatprep.subr.bf16.mxu0 0
        %503 = vmatpush1.bf16.msra.mxu0 0
        %504 = vmatprep.subr.bf16.mxu0 0
        %505 = vmatpush1.bf16.msra.mxu0 0
        %506 = vmatprep.mubr.bf16.mxu0 0
        %507 = vmatmul.mubr.bf16.gmra.mrb[0].mxu0 %v348
        %v508 = vpop.f32.mrb[0].mxu0
        %v509 = vadd.f32 0.0, %v508
        %v510 = vpop.f32.mrb[0].mxu0
        %v511 = vadd.f32 0.0, %v510
        %v512 = vpop.f32.mrb[0].mxu0
        %v513 = vadd.f32 0.0, %v512
        %v514 = vpop.f32.mrb[0].mxu0
        %v515 = vadd.f32 0.0, %v514
        %516 = vdwg.mxu0
        %517 = vmatprep.subr.bf16.mxu0 0
        %518 = vmatpush1.bf16.msra.mxu0 %v464
        %519 = vmatprep.subr.bf16.mxu0 0
        %520 = vmatpush1.bf16.msra.mxu0 %v467
        %521 = vmatprep.subr.bf16.mxu0 0
        %522 = vmatpush1.bf16.msra.mxu0 0
        %523 = vmatprep.subr.bf16.mxu0 0
        %524 = vmatpush1.bf16.msra.mxu0 0
        %525 = vmatprep.subr.bf16.mxu0 0
        %526 = vmatpush1.bf16.msra.mxu0 0
        %527 = vmatprep.subr.bf16.mxu0 0
        %528 = vmatpush1.bf16.msra.mxu0 0
        %529 = vmatprep.subr.bf16.mxu0 0
        %530 = vmatpush1.bf16.msra.mxu0 0
        %531 = vmatprep.subr.bf16.mxu0 0
        %532 = vmatpush1.bf16.msra.mxu0 0
        %533 = vmatprep.subr.bf16.mxu0 0
        %534 = vmatpush1.bf16.msra.mxu0 0
        %535 = vmatprep.subr.bf16.mxu0 0
        %536 = vmatpush1.bf16.msra.mxu0 0
        %537 = vmatprep.subr.bf16.mxu0 0
        %538 = vmatpush1.bf16.msra.mxu0 0
        %539 = vmatprep.subr.bf16.mxu0 0
        %540 = vmatpush1.bf16.msra.mxu0 0
        %541 = vmatprep.subr.bf16.mxu0 0
        %542 = vmatpush1.bf16.msra.mxu0 0
        %543 = vmatprep.subr.bf16.mxu0 0
        %544 = vmatpush1.bf16.msra.mxu0 0
        %545 = vmatprep.subr.bf16.mxu0 0
        %546 = vmatpush1.bf16.msra.mxu0 0
        %547 = vmatprep.subr.bf16.mxu0 0
        %548 = vmatpush1.bf16.msra.mxu0 0
        %549 = vmatprep.mubr.bf16.mxu0 0
        %550 = vmatmul.mubr.bf16.gmra.mrb[0].mxu0 %v348
        %v551 = vpop.f32.mrb[0].mxu0
        %v552 = vadd.f32 0.0, %v551
        %v553 = vpop.f32.mrb[0].mxu0
        %v554 = vpop.f32.mrb[0].mxu0
        %v555 = vadd.f32 0.0, %v554
        %v556 = vpop.f32.mrb[0].mxu0
        %557 = vdwg.mxu0
        %v558 = vmax.f32 %v385, %v509
        %v559 = vmax.f32 %v387, %v511
        %v560 = vmax.f32 %v428, %v552
        %v561 = vmax.f32 %v389, %v513
        %v562 = vmax.f32 %v391, %v515
        %v563 = vmax.f32 %v431, %v555
        %v564 = vld [vmem:[%s264 + $0x60] sm:$0xff]
        %v565 = vld [vmem:[%s264 + $0x68] sm:$0xf]
        %v566 = vld [vmem:[%s264 + $0x6c] sm:$0xff]
        %v567 = vld [vmem:[%s264 + $0x74] sm:$0xf]
        %v568 = vld [vmem:[%s264 + $0x78] sm:$0xff]
        %v569 = vld [vmem:[%s264 + $0x80] sm:$0xf]
        %v570 = vld [vmem:[%s264 + $0x84] sm:$0xff]
        %v571 = vld [vmem:[%s264 + $0x8c] sm:$0xf]
        %v580 = vunpack.c.l.b16 %v564
        %v581 = vunpack.c.h.b16 %v564
        %v582 = vunpack.c.l.b16 %v565
        %v583 = vunpack.c.l.b16 %v566
        %v584 = vunpack.c.h.b16 %v566
        %v585 = vunpack.c.l.b16 %v567
        %v586 = vunpack.c.l.b16 %v568
        %v587 = vunpack.c.h.b16 %v568
        %v588 = vunpack.c.l.b16 %v569
        %v589 = vunpack.c.l.b16 %v570
        %v590 = vunpack.c.h.b16 %v570
        %v591 = vunpack.c.l.b16 %v571
        %v592 = vpack.c.b16 %v583, %v580
        %v593 = vpack.c.b16 %v584, %v581
        %v594 = vpack.c.b16 %v585, %v582
        %v595 = vpack.c.b16 %v589, %v586
        %v596 = vpack.c.b16 %v590, %v587
        %v597 = vpack.c.b16 %v591, %v588
        %604 = vmatprep.subr.bf16.mxu0 %v593
        %605 = vmatpush1.bf16.msra.mxu0 %v592
        %606 = vmatprep.subr.bf16.mxu0 %v596
        %607 = vmatpush1.bf16.msra.mxu0 %v595
        %608 = vmatprep.subr.bf16.mxu0 0
        %609 = vmatpush1.bf16.msra.mxu0 0
        %610 = vmatprep.subr.bf16.mxu0 0
        %611 = vmatpush1.bf16.msra.mxu0 0
        %612 = vmatprep.subr.bf16.mxu0 0
        %613 = vmatpush1.bf16.msra.mxu0 0
        %614 = vmatprep.subr.bf16.mxu0 0
        %615 = vmatpush1.bf16.msra.mxu0 0
        %616 = vmatprep.subr.bf16.mxu0 0
        %617 = vmatpush1.bf16.msra.mxu0 0
        %618 = vmatprep.subr.bf16.mxu0 0
        %619 = vmatpush1.bf16.msra.mxu0 0
        %620 = vmatprep.subr.bf16.mxu0 0
        %621 = vmatpush1.bf16.msra.mxu0 0
        %622 = vmatprep.subr.bf16.mxu0 0
        %623 = vmatpush1.bf16.msra.mxu0 0
        %624 = vmatprep.subr.bf16.mxu0 0
        %625 = vmatpush1.bf16.msra.mxu0 0
        %626 = vmatprep.subr.bf16.mxu0 0
        %627 = vmatpush1.bf16.msra.mxu0 0
        %628 = vmatprep.subr.bf16.mxu0 0
        %629 = vmatpush1.bf16.msra.mxu0 0
        %630 = vmatprep.subr.bf16.mxu0 0
        %631 = vmatpush1.bf16.msra.mxu0 0
        %632 = vmatprep.subr.bf16.mxu0 0
        %633 = vmatpush1.bf16.msra.mxu0 0
        %634 = vmatprep.subr.bf16.mxu0 0
        %635 = vmatpush1.bf16.msra.mxu0 0
        %636 = vmatprep.mubr.bf16.mxu0 0
        %637 = vmatmul.mubr.bf16.gmra.mrb[0].mxu0 %v348
        %v638 = vpop.f32.mrb[0].mxu0
        %v639 = vadd.f32 0.0, %v638
        %v640 = vpop.f32.mrb[0].mxu0
        %v641 = vadd.f32 0.0, %v640
        %v642 = vpop.f32.mrb[0].mxu0
        %v643 = vadd.f32 0.0, %v642
        %v644 = vpop.f32.mrb[0].mxu0
        %v645 = vadd.f32 0.0, %v644
        %646 = vdwg.mxu0
        %647 = vmatprep.subr.bf16.mxu0 0
        %648 = vmatpush1.bf16.msra.mxu0 %v594
        %649 = vmatprep.subr.bf16.mxu0 0
        %650 = vmatpush1.bf16.msra.mxu0 %v597
        %651 = vmatprep.subr.bf16.mxu0 0
        %652 = vmatpush1.bf16.msra.mxu0 0
        %653 = vmatprep.subr.bf16.mxu0 0
        %654 = vmatpush1.bf16.msra.mxu0 0
        %655 = vmatprep.subr.bf16.mxu0 0
        %656 = vmatpush1.bf16.msra.mxu0 0
        %657 = vmatprep.subr.bf16.mxu0 0
        %658 = vmatpush1.bf16.msra.mxu0 0
        %659 = vmatprep.subr.bf16.mxu0 0
        %660 = vmatpush1.bf16.msra.mxu0 0
        %661 = vmatprep.subr.bf16.mxu0 0
        %662 = vmatpush1.bf16.msra.mxu0 0
        %663 = vmatprep.subr.bf16.mxu0 0
        %664 = vmatpush1.bf16.msra.mxu0 0
        %665 = vmatprep.subr.bf16.mxu0 0
        %666 = vmatpush1.bf16.msra.mxu0 0
        %667 = vmatprep.subr.bf16.mxu0 0
        %668 = vmatpush1.bf16.msra.mxu0 0
        %669 = vmatprep.subr.bf16.mxu0 0
        %670 = vmatpush1.bf16.msra.mxu0 0
        %671 = vmatprep.subr.bf16.mxu0 0
        %672 = vmatpush1.bf16.msra.mxu0 0
        %673 = vmatprep.subr.bf16.mxu0 0
        %674 = vmatpush1.bf16.msra.mxu0 0
        %675 = vmatprep.subr.bf16.mxu0 0
        %676 = vmatpush1.bf16.msra.mxu0 0
        %677 = vmatprep.subr.bf16.mxu0 0
        %678 = vmatpush1.bf16.msra.mxu0 0
        %679 = vmatprep.mubr.bf16.mxu0 0
        %680 = vmatmul.mubr.bf16.gmra.mrb[0].mxu0 %v348
        %v681 = vpop.f32.mrb[0].mxu0
        %v682 = vadd.f32 0.0, %v681
        %v683 = vpop.f32.mrb[0].mxu0
        %v684 = vpop.f32.mrb[0].mxu0
        %v685 = vadd.f32 0.0, %v684
        %v686 = vpop.f32.mrb[0].mxu0
        %687 = vdwg.mxu0
        %v688 = vmax.f32 %v558, %v639
        %v689 = vmax.f32 %v559, %v641
        %v690 = vmax.f32 %v560, %v682
        %v691 = vmax.f32 %v561, %v643
        %v692 = vmax.f32 %v562, %v645
        %v693 = vmax.f32 %v563, %v685
        %v694 = vld [vmem:[%s264 + $0x90] sm:$0xff]
        %v695 = vld [vmem:[%s264 + $0x98] sm:$0xf]
        %v696 = vld [vmem:[%s264 + $0x9c] sm:$0xff]
        %v697 = vld [vmem:[%s264 + $0xa4] sm:$0xf]
        %v698 = vld [vmem:[%s264 + $0xa8] sm:$0xff]
        %v699 = vld [vmem:[%s264 + $0xb0] sm:$0xf]
        %v700 = vld [vmem:[%s264 + $0xb4] sm:$0xff]
        %v701 = vld [vmem:[%s264 + $0xbc] sm:$0xf]
        %v710 = vunpack.c.l.b16 %v694
        %v711 = vunpack.c.h.b16 %v694
        %v712 = vunpack.c.l.b16 %v695
        %v713 = vunpack.c.l.b16 %v696
        %v714 = vunpack.c.h.b16 %v696
        %v715 = vunpack.c.l.b16 %v697
        %v716 = vunpack.c.l.b16 %v698
        %v717 = vunpack.c.h.b16 %v698
        %v718 = vunpack.c.l.b16 %v699
        %v719 = vunpack.c.l.b16 %v700
        %v720 = vunpack.c.h.b16 %v700
        %v721 = vunpack.c.l.b16 %v701
        %v722 = vpack.c.b16 %v713, %v710
        %v723 = vpack.c.b16 %v714, %v711
        %v724 = vpack.c.b16 %v715, %v712
        %v725 = vpack.c.b16 %v719, %v716
        %v726 = vpack.c.b16 %v720, %v717
        %v727 = vpack.c.b16 %v721, %v718
        %734 = vmatprep.subr.bf16.mxu0 %v723
        %735 = vmatpush1.bf16.msra.mxu0 %v722
        %736 = vmatprep.subr.bf16.mxu0 %v726
        %737 = vmatpush1.bf16.msra.mxu0 %v725
        %738 = vmatprep.subr.bf16.mxu0 0
        %739 = vmatpush1.bf16.msra.mxu0 0
        %740 = vmatprep.subr.bf16.mxu0 0
        %741 = vmatpush1.bf16.msra.mxu0 0
        %742 = vmatprep.subr.bf16.mxu0 0
        %743 = vmatpush1.bf16.msra.mxu0 0
        %744 = vmatprep.subr.bf16.mxu0 0
        %745 = vmatpush1.bf16.msra.mxu0 0
        %746 = vmatprep.subr.bf16.mxu0 0
        %747 = vmatpush1.bf16.msra.mxu0 0
        %748 = vmatprep.subr.bf16.mxu0 0
        %749 = vmatpush1.bf16.msra.mxu0 0
        %750 = vmatprep.subr.bf16.mxu0 0
        %751 = vmatpush1.bf16.msra.mxu0 0
        %752 = vmatprep.subr.bf16.mxu0 0
        %753 = vmatpush1.bf16.msra.mxu0 0
        %754 = vmatprep.subr.bf16.mxu0 0
        %755 = vmatpush1.bf16.msra.mxu0 0
        %756 = vmatprep.subr.bf16.mxu0 0
        %757 = vmatpush1.bf16.msra.mxu0 0
        %758 = vmatprep.subr.bf16.mxu0 0
        %759 = vmatpush1.bf16.msra.mxu0 0
        %760 = vmatprep.subr.bf16.mxu0 0
        %761 = vmatpush1.bf16.msra.mxu0 0
        %762 = vmatprep.subr.bf16.mxu0 0
        %763 = vmatpush1.bf16.msra.mxu0 0
        %764 = vmatprep.subr.bf16.mxu0 0
        %765 = vmatpush1.bf16.msra.mxu0 0
        %766 = vmatprep.mubr.bf16.mxu0 0
        %767 = vmatmul.mubr.bf16.gmra.mrb[0].mxu0 %v348
        %v768 = vpop.f32.mrb[0].mxu0
        %v769 = vadd.f32 0.0, %v768
        %v770 = vpop.f32.mrb[0].mxu0
        %v771 = vadd.f32 0.0, %v770
        %v772 = vpop.f32.mrb[0].mxu0
        %v773 = vadd.f32 0.0, %v772
        %v774 = vpop.f32.mrb[0].mxu0
        %v775 = vadd.f32 0.0, %v774
        %776 = vdwg.mxu0
        %777 = vmatprep.subr.bf16.mxu0 0
        %778 = vmatpush1.bf16.msra.mxu0 %v724
        %779 = vmatprep.subr.bf16.mxu0 0
        %780 = vmatpush1.bf16.msra.mxu0 %v727
        %781 = vmatprep.subr.bf16.mxu0 0
        %782 = vmatpush1.bf16.msra.mxu0 0
        %783 = vmatprep.subr.bf16.mxu0 0
        %784 = vmatpush1.bf16.msra.mxu0 0
        %785 = vmatprep.subr.bf16.mxu0 0
        %786 = vmatpush1.bf16.msra.mxu0 0
        %787 = vmatprep.subr.bf16.mxu0 0
        %788 = vmatpush1.bf16.msra.mxu0 0
        %789 = vmatprep.subr.bf16.mxu0 0
        %790 = vmatpush1.bf16.msra.mxu0 0
        %791 = vmatprep.subr.bf16.mxu0 0
        %792 = vmatpush1.bf16.msra.mxu0 0
        %793 = vmatprep.subr.bf16.mxu0 0
        %794 = vmatpush1.bf16.msra.mxu0 0
        %795 = vmatprep.subr.bf16.mxu0 0
        %796 = vmatpush1.bf16.msra.mxu0 0
        %797 = vmatprep.subr.bf16.mxu0 0
        %798 = vmatpush1.bf16.msra.mxu0 0
        %799 = vmatprep.subr.bf16.mxu0 0
        %800 = vmatpush1.bf16.msra.mxu0 0
        %801 = vmatprep.subr.bf16.mxu0 0
        %802 = vmatpush1.bf16.msra.mxu0 0
        %803 = vmatprep.subr.bf16.mxu0 0
        %804 = vmatpush1.bf16.msra.mxu0 0
        %805 = vmatprep.subr.bf16.mxu0 0
        %806 = vmatpush1.bf16.msra.mxu0 0
        %807 = vmatprep.subr.bf16.mxu0 0
        %808 = vmatpush1.bf16.msra.mxu0 0
        %809 = vmatprep.mubr.bf16.mxu0 0
        %810 = vmatmul.mubr.bf16.gmra.mrb[0].mxu0 %v348
        %v811 = vpop.f32.mrb[0].mxu0
        %v812 = vadd.f32 0.0, %v811
        %v813 = vpop.f32.mrb[0].mxu0
        %v814 = vpop.f32.mrb[0].mxu0
        %v815 = vadd.f32 0.0, %v814
        %v816 = vpop.f32.mrb[0].mxu0
        %817 = vdwg.mxu0
        %v818 = vmax.f32 %v688, %v769
        %v819 = vmax.f32 %v689, %v771
        %v820 = vmax.f32 %v690, %v812
        %v821 = vmax.f32 %v691, %v773
        %v822 = vmax.f32 %v692, %v775
        %v823 = vmax.f32 %v693, %v815
        %v824 = vld [vmem:[%s2] sm:$0xff]
        %v825 = vld [vmem:[%s2 + $0x8] sm:$0xff]
        %827 = vset.pattern.permute.xlu0 0
        %828 = vperm.xlu0 %827, %v824
        %v829 = vpop.permute.xlu0 %828
        %832 = vset.pattern.permute.xlu0 0
        %833 = vperm.xlu0 %832, %v825
        %v834 = vpop.permute.xlu0 %833
        %v836 = vadd.f32 %v818, %v829
        %v837 = vadd.f32 %v819, %v829
        %v838 = vadd.f32 %v820, %v829
        %v839 = vadd.f32 %v821, %v834
        %v840 = vadd.f32 %v822, %v834
        %v841 = vadd.f32 %v823, %v834
        %v842 = vmul.f32 %v836, 0.01
        %v843 = vmul.f32 %v837, 0.01
        %v844 = vmul.f32 %v838, 0.01
        %v845 = vmul.f32 %v839, 0.01
        %v846 = vmul.f32 %v840, 0.01
        %v847 = vmul.f32 %v841, 0.01
        %v848 = vmax.f32 %v836, %v842
        %v849 = vmax.f32 %v837, %v843
        %v850 = vmax.f32 %v838, %v844
        %v851 = vmax.f32 %v839, %v845
        %v852 = vmax.f32 %v840, %v846
        %v853 = vmax.f32 %v841, %v847
        %v854 = vpack.c.bf16 %v851, %v848
        %v855 = vpack.c.bf16 %v852, %v849
        %v856 = vpack.c.bf16 %v853, %v850
        %v860 = vunpack.c.l.b16 %v854
        %v861 = vunpack.c.l.b16 %v855
        %v862 = vunpack.c.l.b16 %v856
        %v863 = vunpack.c.h.b16 %v854
        %v864 = vunpack.c.h.b16 %v855
        %v865 = vunpack.c.h.b16 %v856
        %v866 = vpack.c.b16 %v861, %v860
        %v867 = vpack.c.b16 %v862, %v862
        %v868 = vpack.c.b16 %v864, %v863
        %v869 = vpack.c.b16 %v865, %v865
        %874 = vst [vmem:[%s283] sm:$0xff] %v866
        %875 = vst [vmem:[%s283 + $0x8] sm:$0xf] %v867
        %876 = vst [vmem:[%s283 + $0xc] sm:$0xff] %v868
        %877 = vst [vmem:[%s283 + $0x14] sm:$0xf] %v869
        %s878 = smul.u32 %s16, 384
        %v879 = vlaneseq
        %v880 = vand.u32 %v879, 127
        %v881 = vadd.s32 %v880, 128
        %v882 = vadd.s32 %v880, 256
        %v883 = vstv %s878
        %v884 = vadd.s32 %v883, %v880
        %v885 = vadd.s32 %v883, %v881
        %v886 = vadd.s32 %v883, %v882
        %vm887 = vcmp.lt.s32.totalorder %v884, 768
        %vm888 = vcmp.lt.s32.totalorder %v885, 768
        %vm889 = vcmp.lt.s32.totalorder %v886, 768
        %v890 = vsel %vm887, 1, 0
        %v891 = vsel %vm888, 1, 0
        %v892 = vsel %vm889, 1, 0
        %vm893 = vcmp.eq.s32.totalorder %v890, 1
        %vm894 = vcmp.eq.s32.totalorder %v891, 1
        %vm895 = vcmp.eq.s32.totalorder %v892, 1
        %v896 = vsel %vm893, %v848, 0.0
        %v897 = vsel %vm894, %v849, 0.0
        %v898 = vsel %vm895, %v850, 0.0
        %v899 = vsel %vm893, %v851, 0.0
        %v900 = vsel %vm894, %v852, 0.0
        %v901 = vsel %vm895, %v853, 0.0
        %v902 = vadd.f32 %v896, %v897
        %v903 = vadd.f32 %v902, %v898
        %904 = vadd.xlane.f32.xlu0 %v903
        %v905 = vpop.xlane.xlu0 %904
        %v906 = vadd.f32 %v899, %v900
        %v907 = vadd.f32 %v906, %v901
        %908 = vadd.xlane.f32.xlu0 %v907
        %v909 = vpop.xlane.xlu0 %908
        %vm910 = vcmask 7168
        %911 = vst.msk [vmem:[%s297] sm:$0xff] %vm910, %v905
        %912 = vst.msk [vmem:[%s297 + $0x8] sm:$0xff] %vm910, %v909
        %v913 = vmul.f32 %v896, %v896
        %v914 = vmul.f32 %v897, %v897
        %v915 = vmul.f32 %v898, %v898
        %v916 = vmul.f32 %v899, %v899
        %v917 = vmul.f32 %v900, %v900
        %v918 = vmul.f32 %v901, %v901
        %v919 = vadd.f32 %v913, %v914
        %v920 = vadd.f32 %v919, %v915
        %921 = vadd.xlane.f32.xlu0 %v920
        %v922 = vpop.xlane.xlu0 %921
        %v923 = vadd.f32 %v916, %v917
        %v924 = vadd.f32 %v923, %v918
        %925 = vadd.xlane.f32.xlu0 %v924
        %v926 = vpop.xlane.xlu0 %925
        %vm927 = vcmask 15368
        %928 = vst.msk [vmem:[%s297] sm:$0xff] %vm927, %v922
        %929 = vst.msk [vmem:[%s297 + $0x8] sm:$0xff] %vm927, %v926
        %s930 = sand.u32 %s92, 1
        %s931 = sand.u32 %s92, 1
        %s932 = smul.addr %s931, 24
        %s933 = scalar_lea.vmem [#allocation3], %s932
        %p934 = scmp.lt.s32.totalorder %s16, 1
        %s935 = scalar_select %p934, %s16, 1
        %s936 = smul.addr %s935, 2
        %s937 = smul.addr %s936, 8
        %s938 = scalar_lea.vmem %s4, %s937
        // Predicated region
        $region59: #{_lambda_.3} parent=53 // pred_check
          %p939 = pneg %p102
        $region60: #{_lambda_.3} parent=53 // pred_check_branch
          %941 = sbr.rel (%p939) target = $region62
        $region61: #{_lambda_.3} parent=53 // pred_region
          %s942 = smul.u32 3, %s16
          %s943 = smul.addr %s942, 4
          %s944 = scalar_lea.vmem %s3, %s943
          // Predicated region
          $region63: #{_lambda_.3} parent=61 // pred_check
            _
          $region64: #{_lambda_.3} parent=61 // pred_check_branch
            %946 = sbr.rel (0) target = $region66
          $region65: #{_lambda_.3} parent=61 // pred_region
            // Predicated region
            $region67: #{_lambda_.3} parent=65 // pred_check
              _
            $region68: #{_lambda_.3} parent=65 // pred_check_branch
              %948 = sbr.rel (0) target = $region70
            $region69: #{_lambda_.3} parent=65 // pred_region
              %s949 = scalar_lea.vmem %s933, 8 [#allocation3]
              %s950 = scalar_lea.vmem %s944, 8
              loop: start=0, step=1, limit=1
              $region71: #{_lambda_.3} parent=69 // loop_pre_header
                _
              $region72: #{_lambda_.3} parent=69 // loop_header
                %s952 = sphi 0, %s956
                %p953 = scmp.ge.s32.totalorder %s952, 1
                %s957 = sphi %s933, %s933
                %s958 = sphi %s944, %s944
              $region73: #{_lambda_.3} parent=69 // loop_header_branch
                %955 = sbr.rel (%p953) target = $region77
              $region74: #{_lambda_.3} parent=69 // loop_body
                %v959 = vld [vmem:[%s957] sm:$0xff]
                %960 = vst [vmem:[%s958] sm:$0xff] %v959
                %v961 = vld [vmem:[%s957 + $0xc] sm:$0xff]
                %962 = vst [vmem:[%s958 + $0x18] sm:$0xff] %v961
              $region75: #{_lambda_.3} parent=69 // loop_footer
                %s956 = sadd.s32 1, %s952
              $region76: #{_lambda_.3} parent=69 // loop_footer_branch
                %951 = sbr.rel target = $region72
              $region77: #{_lambda_.3} parent=69 // loop_exit
                _
              loop: start=0, step=1, limit=1
              $region78: #{_lambda_.3} parent=69 // loop_pre_header
                _
              $region79: #{_lambda_.3} parent=69 // loop_header
                %s965 = sphi 0, %s969
                %p966 = scmp.ge.s32.totalorder %s965, 1
                %s970 = sphi %s949, %s949
                %s971 = sphi %s950, %s950
              $region80: #{_lambda_.3} parent=69 // loop_header_branch
                %968 = sbr.rel (%p966) target = $region84
              $region81: #{_lambda_.3} parent=69 // loop_body
                %v972 = vld [vmem:[%s970] sm:$0xf]
                %973 = vst [vmem:[%s971] sm:$0xf] %v972
                %v974 = vld [vmem:[%s970 + $0xc] sm:$0xf]
                %975 = vst [vmem:[%s971 + $0x18] sm:$0xf] %v974
              $region82: #{_lambda_.3} parent=69 // loop_footer
                %s969 = sadd.s32 1, %s965
              $region83: #{_lambda_.3} parent=69 // loop_footer_branch
                %964 = sbr.rel target = $region79
              $region84: #{_lambda_.3} parent=69 // loop_exit
                _
            $region70: #{_lambda_.3} parent=65 // pred_fallthru
              _
          $region66: #{_lambda_.3} parent=61 // pred_fallthru
            _
          %976 = vnop
        $region62: #{_lambda_.3} parent=53 // pred_fallthru
          _
        // Predicated region
        $region85: #{_lambda_.3} parent=53 // pred_check
          %p977 = pneg %p128
        $region86: #{_lambda_.3} parent=53 // pred_check_branch
          %979 = sbr.rel (%p977) target = $region88
        $region87: #{_lambda_.3} parent=53 // pred_region
          _
        $region88: #{_lambda_.3} parent=53 // pred_fallthru
          _
      $region54: #{_lambda_.3} parent=5 // pred_fallthru
        _
      %p980 = scmp.le.s32.totalorder 2, %s11
      // Predicated region
      $region89: #{_lambda_.3} parent=5 // pred_check
        %p981 = pneg %p980
      $region90: #{_lambda_.3} parent=5 // pred_check_branch
        %983 = sbr.rel (%p981) target = $region92
      $region91: #{_lambda_.3} parent=5 // pred_region
        %s984 = ssub.s32 %s11, 2
        // Predicated region
        $region93: #{_lambda_.3} parent=91 // pred_check
          %p985 = pneg %p108
        $region94: #{_lambda_.3} parent=91 // pred_check_branch
          %987 = sbr.rel (%p985) target = $region96
        $region95: #{_lambda_.3} parent=91 // pred_region
          %s988 = sand.u32 %s93, 1
          %s989 = sand.u32 %s93, 1
          %s990 = smul.addr %s989, 24
          %s991 = scalar_lea.vmem [#allocation3], %s990
        $region96: #{_lambda_.3} parent=91 // pred_fallthru
          _
        // Predicated region
        $region97: #{_lambda_.3} parent=91 // pred_check
          %p992 = pneg %p134
        $region98: #{_lambda_.3} parent=91 // pred_check_branch
          %994 = sbr.rel (%p992) target = $region100
        $region99: #{_lambda_.3} parent=91 // pred_region
          %p995 = scmp.lt.s32.totalorder %s17, 1
          %s996 = scalar_select %p995, %s17, 1
          %s997 = smul.addr %s996, 2
          %s998 = smul.addr %s997, 8
          %s999 = scalar_lea.vmem %s4, %s998
        $region100: #{_lambda_.3} parent=91 // pred_fallthru
          _
      $region92: #{_lambda_.3} parent=5 // pred_fallthru
        _
    $region6: #{_lambda_.3} parent=1 // loop_footer
      %s15 = sadd.s32 1, %s11
    $region7: #{_lambda_.3} parent=1 // loop_footer_branch
      %10 = sbr.rel target = $region3
    $region8: #{_lambda_.3} parent=1 // loop_exit
      _

// kernel: _lambda_.5
$region0: #{_lambda_.5}
  #allocation0 [shape = 'u32[]', space=smem, size = 0x4, offset = 0x4, fixed_abs, tag = 'smem constant byte address 0x4 - core index']
  #allocation1 [shape = 'u32[144,128]{1,0:T(1,128)}', space=vmem, size = 0x12000, scoped, tag = 'internal scratch']
  %s0 = inlined_call_operand.vmem [shape: bf16[16,256], index: 0, kind: input, shape index: {}]
  %s1 = inlined_call_operand.vmem [shape: f32[16,1], index: 1, kind: input, shape index: {}]
  %s2 = inlined_call_operand.vmem [shape: f32[16,1], index: 2, kind: input, shape index: {}]
  %s3 = inlined_call_operand.vmem [shape: f32[16,256], index: 3, kind: output, shape index: {}]
  %s4 = sld [smem:[#allocation0]]
  $region120: #{_lambda_.5} parent=0
    _
  %s6 = ssub.s32 1, %s4
  %s7 = scalar_select 0, %s6, %s4
  $region1: #{_lambda_.5} parent=0
    #allocation2 [shape = 'u8[8192]{0}', space=vmem, size = 0x2000, scoped, tag = 'input window, operand 0']
    #allocation3 [shape = 'u8[16384]{0}', space=vmem, size = 0x4000, scoped, tag = 'output window, operand 0']
    loop: start=0, step=1, limit=4
    $region2: #{_lambda_.5} parent=1 // loop_pre_header
      _
    $region3: #{_lambda_.5} parent=1 // loop_header
      %s9 = sphi 0, %s13
      %p10 = scmp.ge.s32.totalorder %s9, 4
      %s19 = sphi 0, %s21
      %s22 = sphi 0, %s19
      %s23 = sphi 0, %s22
      %s39 = sphi 0, %s23
      %s43 = sphi 0, %s43
      %s45 = sphi 0, %s43
      %s46 = sphi 0, %s45
      %s60 = sphi 0, %s46
      %s64 = sphi 0, %s64
      %s66 = sphi 0, %s64
      %s67 = sphi 0, %s66
      %s81 = sphi 0, %s67
      %s87 = sphi 0, %s89
      %s90 = sphi 0, %s87
      %s91 = sphi 0, %s90
      %s107 = sphi 0, %s91
    $region4: #{_lambda_.5} parent=1 // loop_header_branch
      %12 = sbr.rel (%p10) target = $region8
    $region5: #{_lambda_.5} parent=1 // loop_body
      %s14 = ssub.s32 %s9, 1
      %s15 = ssub.s32 %s9, 2
      %s16 = sadd.s32 %s9, 1
      %s17 = ssub.s32 %s9, %s16
      %p18 = scmp.eq.s32.totalorder %s17, 0
      %s20 = sadd.s32 %s19, 1
      %s21 = scalar_select %p18, %s19, %s20
      %p24 = pneg %p18
      %p25 = scmp.eq.s32.totalorder %s9, 1
      %p26 = por %p24, %p25
      %p27 = scmp.ne.s32.totalorder %s19, %s22
      %p28 = scmp.eq.s32.totalorder %s9, 0
      %p29 = por %p27, %p28
      %p30 = scmp.ne.s32.totalorder %s19, %s22
      %p31 = scmp.eq.s32.totalorder %s14, 1
      %p32 = por %p30, %p31
      %p33 = scmp.ne.s32.totalorder %s22, %s23
      %p34 = scmp.eq.s32.totalorder %s14, 0
      %p35 = por %p33, %p34
      %p36 = scmp.ne.s32.totalorder %s22, %s23
      %p37 = scmp.eq.s32.totalorder %s15, 1
      %p38 = por %p36, %p37
      %p40 = scmp.ne.s32.totalorder %s23, %s39
      %p41 = scmp.eq.s32.totalorder %s15, 0
      %p42 = por %p40, %p41
      %s44 = sadd.s32 %s43, 1
      %p47 = scmp.eq.s32.totalorder %s9, 1
      %p48 = scmp.ne.s32.totalorder %s43, %s45
      %p49 = scmp.eq.s32.totalorder %s9, 0
      %p50 = por %p48, %p49
      %p51 = scmp.ne.s32.totalorder %s43, %s45
      %p52 = scmp.eq.s32.totalorder %s14, 1
      %p53 = por %p51, %p52
      %p54 = scmp.ne.s32.totalorder %s45, %s46
      %p55 = scmp.eq.s32.totalorder %s14, 0
      %p56 = por %p54, %p55
      %p57 = scmp.ne.s32.totalorder %s45, %s46
      %p58 = scmp.eq.s32.totalorder %s15, 1
      %p59 = por %p57, %p58
      %p61 = scmp.ne.s32.totalorder %s46, %s60
      %p62 = scmp.eq.s32.totalorder %s15, 0
      %p63 = por %p61, %p62
      %s65 = sadd.s32 %s64, 1
      %p68 = scmp.eq.s32.totalorder %s9, 1
      %p69 = scmp.ne.s32.totalorder %s64, %s66
      %p70 = scmp.eq.s32.totalorder %s9, 0
      %p71 = por %p69, %p70
      %p72 = scmp.ne.s32.totalorder %s64, %s66
      %p73 = scmp.eq.s32.totalorder %s14, 1
      %p74 = por %p72, %p73
      %p75 = scmp.ne.s32.totalorder %s66, %s67
      %p76 = scmp.eq.s32.totalorder %s14, 0
      %p77 = por %p75, %p76
      %p78 = scmp.ne.s32.totalorder %s66, %s67
      %p79 = scmp.eq.s32.totalorder %s15, 1
      %p80 = por %p78, %p79
      %p82 = scmp.ne.s32.totalorder %s67, %s81
      %p83 = scmp.eq.s32.totalorder %s15, 0
      %p84 = por %p82, %p83
      %s85 = ssub.s32 %s9, %s16
      %p86 = scmp.eq.s32.totalorder %s85, 0
      %s88 = sadd.s32 %s87, 1
      %s89 = scalar_select %p86, %s87, %s88
      %p92 = pneg %p86
      %p93 = scmp.eq.s32.totalorder %s9, 1
      %p94 = por %p92, %p93
      %p95 = scmp.ne.s32.totalorder %s87, %s90
      %p96 = scmp.eq.s32.totalorder %s9, 0
      %p97 = por %p95, %p96
      %p98 = scmp.ne.s32.totalorder %s87, %s90
      %p99 = scmp.eq.s32.totalorder %s14, 1
      %p100 = por %p98, %p99
      %p101 = scmp.ne.s32.totalorder %s90, %s91
      %p102 = scmp.eq.s32.totalorder %s14, 0
      %p103 = por %p101, %p102
      %p104 = scmp.ne.s32.totalorder %s90, %s91
      %p105 = scmp.eq.s32.totalorder %s15, 1
      %p106 = por %p104, %p105
      %p108 = scmp.ne.s32.totalorder %s91, %s107
      %p109 = scmp.eq.s32.totalorder %s15, 0
      %p110 = por %p108, %p109
      %p111 = scmp.le.s32.totalorder 1, %s9
      %p112 = scmp.lt.s32.totalorder %s9, 3
      %p113 = pnand %p111, %p112
      %p114 = pneg %p113
      // Predicated region
      $region9: #{_lambda_.5} parent=5 // pred_check
        _
      $region10: #{_lambda_.5} parent=5 // pred_check_branch
        %116 = sbr.rel (%p113) target = $region12
      $region11: #{_lambda_.5} parent=5 // pred_region
        %s117 = ssub.s32 %s9, 1
        // Predicated region
        $region13: #{_lambda_.5} parent=11 // pred_check
          %p118 = pneg %p56
        $region14: #{_lambda_.5} parent=11 // pred_check_branch
          %120 = sbr.rel (%p118) target = $region16
        $region15: #{_lambda_.5} parent=11 // pred_region
          _
        $region16: #{_lambda_.5} parent=11 // pred_fallthru
          _
        // Predicated region
        $region17: #{_lambda_.5} parent=11 // pred_check
          %p121 = pneg %p77
        $region18: #{_lambda_.5} parent=11 // pred_check_branch
          %123 = sbr.rel (%p121) target = $region20
        $region19: #{_lambda_.5} parent=11 // pred_region
          _
        $region20: #{_lambda_.5} parent=11 // pred_fallthru
          _
      $region12: #{_lambda_.5} parent=5 // pred_fallthru
        _
      %p124 = scmp.lt.s32.totalorder %s9, 2
      // Predicated region
      $region21: #{_lambda_.5} parent=5 // pred_check
        %p125 = pneg %p124
      $region22: #{_lambda_.5} parent=5 // pred_check_branch
        %127 = sbr.rel (%p125) target = $region24
      $region23: #{_lambda_.5} parent=5 // pred_region
        // Predicated region
        $region25: #{_lambda_.5} parent=23 // pred_check
          %p128 = pneg %p29
        $region26: #{_lambda_.5} parent=23 // pred_check_branch
          %130 = sbr.rel (%p128) target = $region28
        $region27: #{_lambda_.5} parent=23 // pred_region
          %s131 = sand.u32 %s19, 1
          %s132 = sand.u32 %s19, 1
          %s133 = smul.addr %s132, 8
          %s134 = scalar_lea.vmem [#allocation2], %s133
          %s135 = smul.addr %s9, 4
          %s136 = scalar_lea.vmem %s0, %s135
          // Predicated region
          $region29: #{_lambda_.5} parent=27 // pred_check
            _
          $region30: #{_lambda_.5} parent=27 // pred_check_branch
            %138 = sbr.rel (0) target = $region32
          $region31: #{_lambda_.5} parent=27 // pred_region
            // Predicated region
            $region33: #{_lambda_.5} parent=31 // pred_check
              _
            $region34: #{_lambda_.5} parent=31 // pred_check_branch
              %140 = sbr.rel target = $region36
            $region35: #{_lambda_.5} parent=31 // pred_region
              // Predicated region
              $region48: #{_lambda_.5} parent=35 // pred_check
                _
              $region49: #{_lambda_.5} parent=35 // pred_check_branch
                %157 = sbr.rel (0) target = $region51
              $region50: #{_lambda_.5} parent=35 // pred_region
                loop: start=0, step=1, limit=1
                $region52: #{_lambda_.5} parent=50 // loop_pre_header
                  _
                $region53: #{_lambda_.5} parent=50 // loop_header
                  %s159 = sphi 0, %s163
                  %p160 = scmp.ge.s32.totalorder %s159, 1
                  %s164 = sphi %s136, %s136
                  %s165 = sphi %s134, %s134
                $region54: #{_lambda_.5} parent=50 // loop_header_branch
                  %162 = sbr.rel (%p160) target = $region58
                $region55: #{_lambda_.5} parent=50 // loop_body
                  _
                $region56: #{_lambda_.5} parent=50 // loop_footer
                  %s163 = sadd.s32 1, %s159
                $region57: #{_lambda_.5} parent=50 // loop_footer_branch
                  %158 = sbr.rel target = $region53
                $region58: #{_lambda_.5} parent=50 // loop_exit
                  _
                loop: start=0, step=1, limit=1
                $region59: #{_lambda_.5} parent=50 // loop_pre_header
                  _
                $region60: #{_lambda_.5} parent=50 // loop_header
                  %s168 = sphi 0, %s172
                  %p169 = scmp.ge.s32.totalorder %s168, 1
                  %s173 = sphi %s136, %s136
                  %s174 = sphi %s134, %s134
                $region61: #{_lambda_.5} parent=50 // loop_header_branch
                  %171 = sbr.rel (%p169) target = $region65
                $region62: #{_lambda_.5} parent=50 // loop_body
                  %v175 = vld [vmem:[%s173] sm:$0xf]
                  %176 = vst [vmem:[%s174] sm:$0xf] %v175
                  %v177 = vld [vmem:[%s173 + $0x8] sm:$0xf]
                  %178 = vst [vmem:[%s174 + $0x4] sm:$0xf] %v177
                $region63: #{_lambda_.5} parent=50 // loop_footer
                  %s172 = sadd.s32 1, %s168
                $region64: #{_lambda_.5} parent=50 // loop_footer_branch
                  %167 = sbr.rel target = $region60
                $region65: #{_lambda_.5} parent=50 // loop_exit
                  _
              $region51: #{_lambda_.5} parent=35 // pred_fallthru
                _
            $region36: #{_lambda_.5} parent=31 // pred_fallthru
              _
            // Predicated region
            $region37: #{_lambda_.5} parent=31 // pred_check
              _
            $region38: #{_lambda_.5} parent=31 // pred_check_branch
              %142 = sbr.rel (0) target = $region40
            $region39: #{_lambda_.5} parent=31 // pred_region
              loop: start=0, step=1, limit=1
              $region41: #{_lambda_.5} parent=39 // loop_pre_header
                _
              $region42: #{_lambda_.5} parent=39 // loop_header
                %s145 = sphi 0, %s149
                %p146 = scmp.ge.s32.totalorder %s145, 1
                %s150 = sphi %s136, %s136
                %s151 = sphi %s134, %s134
              $region43: #{_lambda_.5} parent=39 // loop_header_branch
                %148 = sbr.rel (%p146) target = $region47
              $region44: #{_lambda_.5} parent=39 // loop_body
                %v152 = vld [vmem:[%s150] sm:$0xf]
                %153 = vst [vmem:[%s151] sm:$0xf] %v152
                %v154 = vld [vmem:[%s150 + $0x8] sm:$0xf]
                %155 = vst [vmem:[%s151 + $0x4] sm:$0xf] %v154
              $region45: #{_lambda_.5} parent=39 // loop_footer
                %s149 = sadd.s32 1, %s145
              $region46: #{_lambda_.5} parent=39 // loop_footer_branch
                %144 = sbr.rel target = $region42
              $region47: #{_lambda_.5} parent=39 // loop_exit
                _
            $region40: #{_lambda_.5} parent=31 // pred_fallthru
              _
          $region32: #{_lambda_.5} parent=27 // pred_fallthru
            _
          %179 = vnop
        $region28: #{_lambda_.5} parent=23 // pred_fallthru
          _
      $region24: #{_lambda_.5} parent=5 // pred_fallthru
        _
      %p180 = scmp.le.s32.totalorder 1, %s9
      %p181 = scmp.lt.s32.totalorder %s9, 3
      %p182 = pnand %p180, %p181
      %p183 = pneg %p182
      // Predicated region
      $region66: #{_lambda_.5} parent=5 // pred_check
        _
      $region67: #{_lambda_.5} parent=5 // pred_check_branch
        %185 = sbr.rel (%p182) target = $region69
      $region68: #{_lambda_.5} parent=5 // pred_region
        %s186 = ssub.s32 %s9, 1
        %s187 = sand.u32 %s22, 1
        %s188 = sand.u32 %s22, 1
        %s189 = smul.addr %s188, 8
        %s190 = scalar_lea.vmem [#allocation2], %s189
        // Predicated region
        $region70: #{_lambda_.5} parent=68 // pred_check
          %p191 = pneg %p35
        $region71: #{_lambda_.5} parent=68 // pred_check_branch
          %193 = sbr.rel (%p191) target = $region73
        $region72: #{_lambda_.5} parent=68 // pred_region
          _
        $region73: #{_lambda_.5} parent=68 // pred_fallthru
          _
        %s194 = sand.u32 %s22, 1
        %s195 = sand.u32 %s22, 1
        %s196 = smul.addr %s195, 8
        %s197 = scalar_lea.vmem [#allocation2], %s196
        %p198 = pneg %p35
        %p199 = pneg %p32
        %p200 = pneg %p56
        %p201 = pneg %p53
        %p202 = pneg %p77
        %p203 = pneg %p74
        %p204 = pneg %p103
        %p205 = pneg %p100
        %s206 = sand.u32 %s90, 1
        %s207 = sand.u32 %s90, 1
        %s208 = smul.addr %s207, 16
        %s209 = scalar_lea.vmem [#allocation3], %s208
        %v210 = vld [vmem:[%s190] sm:$0xf]
        %v211 = vld [vmem:[%s190 + $0x4] sm:$0xf]
        %v212 = vunpack.c.l.bf16 %v210
        %v213 = vunpack.c.l.bf16 %v211
        %v214 = vld [vmem:[%s1] sm:$0xff]
        %v215 = vld [vmem:[%s1 + $0x8] sm:$0xff]
        %217 = vset.pattern.permute.xlu0 0
        %218 = vperm.xlu0 %217, %v214
        %v219 = vpop.permute.xlu0 %218
        %222 = vset.pattern.permute.xlu0 0
        %223 = vperm.xlu0 %222, %v215
        %v224 = vpop.permute.xlu0 %223
        %v226 = vmul.f32 %v212, %v219
        %v227 = vmul.f32 %v213, %v224
        %v228 = vld [vmem:[%s2] sm:$0xff]
        %v229 = vld [vmem:[%s2 + $0x8] sm:$0xff]
        %231 = vset.pattern.permute.xlu0 0
        %232 = vperm.xlu0 %231, %v228
        %v233 = vpop.permute.xlu0 %232
        %236 = vset.pattern.permute.xlu0 0
        %237 = vperm.xlu0 %236, %v229
        %v238 = vpop.permute.xlu0 %237
        %v240 = vadd.f32 %v226, %v233
        %v241 = vadd.f32 %v227, %v238
        %242 = vst [vmem:[%s209] sm:$0xff] %v240
        %243 = vst [vmem:[%s209 + $0x8] sm:$0xff] %v241
        %s244 = sand.u32 %s90, 1
        %s245 = sand.u32 %s90, 1
        %s246 = smul.addr %s245, 16
        %s247 = scalar_lea.vmem [#allocation3], %s246
        // Predicated region
        $region74: #{_lambda_.5} parent=68 // pred_check
          %p248 = pneg %p100
        $region75: #{_lambda_.5} parent=68 // pred_check_branch
          %250 = sbr.rel (%p248) target = $region77
        $region76: #{_lambda_.5} parent=68 // pred_region
          %s251 = smul.addr %s14, 8
          %s252 = scalar_lea.vmem %s3, %s251
          // Predicated region
          $region78: #{_lambda_.5} parent=76 // pred_check
            _
          $region79: #{_lambda_.5} parent=76 // pred_check_branch
            %254 = sbr.rel (0) target = $region81
          $region80: #{_lambda_.5} parent=76 // pred_region
            // Predicated region
            $region82: #{_lambda_.5} parent=80 // pred_check
              _
            $region83: #{_lambda_.5} parent=80 // pred_check_branch
              %256 = sbr.rel (0) target = $region85
            $region84: #{_lambda_.5} parent=80 // pred_region
              // Predicated region
              $region97: #{_lambda_.5} parent=84 // pred_check
                _
              $region98: #{_lambda_.5} parent=84 // pred_check_branch
                %273 = sbr.rel (0) target = $region100
              $region99: #{_lambda_.5} parent=84 // pred_region
                loop: start=0, step=1, limit=1
                $region101: #{_lambda_.5} parent=99 // loop_pre_header
                  _
                $region102: #{_lambda_.5} parent=99 // loop_header
                  %s275 = sphi 0, %s279
                  %p276 = scmp.ge.s32.totalorder %s275, 1
                  %s280 = sphi %s247, %s247
                  %s281 = sphi %s252, %s252
                $region103: #{_lambda_.5} parent=99 // loop_header_branch
                  %278 = sbr.rel (%p276) target = $region107
                $region104: #{_lambda_.5} parent=99 // loop_body
                  %v282 = vld [vmem:[%s280] sm:$0xff]
                  %283 = vst [vmem:[%s281] sm:$0xff] %v282
                  %v284 = vld [vmem:[%s280 + $0x8] sm:$0xff]
                  %285 = vst [vmem:[%s281 + $0x10] sm:$0xff] %v284
                $region105: #{_lambda_.5} parent=99 // loop_footer
                  %s279 = sadd.s32 1, %s275
                $region106: #{_lambda_.5} parent=99 // loop_footer_branch
                  %274 = sbr.rel target = $region102
                $region107: #{_lambda_.5} parent=99 // loop_exit
                  _
              $region100: #{_lambda_.5} parent=84 // pred_fallthru
                _
              // Predicated region
              $region108: #{_lambda_.5} parent=84 // pred_check
                _
              $region109: #{_lambda_.5} parent=84 // pred_check_branch
                %287 = sbr.rel target = $region111
              $region110: #{_lambda_.5} parent=84 // pred_region
                _
              $region111: #{_lambda_.5} parent=84 // pred_fallthru
                _
            $region85: #{_lambda_.5} parent=80 // pred_fallthru
              _
            // Predicated region
            $region86: #{_lambda_.5} parent=80 // pred_check
              _
            $region87: #{_lambda_.5} parent=80 // pred_check_branch
              %258 = sbr.rel target = $region89
            $region88: #{_lambda_.5} parent=80 // pred_region
              loop: start=0, step=1, limit=1
              $region90: #{_lambda_.5} parent=88 // loop_pre_header
                _
              $region91: #{_lambda_.5} parent=88 // loop_header
                %s261 = sphi 0, %s265
                %p262 = scmp.ge.s32.totalorder %s261, 1
                %s266 = sphi %s247, %s247
                %s267 = sphi %s252, %s252
              $region92: #{_lambda_.5} parent=88 // loop_header_branch
                %264 = sbr.rel (%p262) target = $region96
              $region93: #{_lambda_.5} parent=88 // loop_body
                %v268 = vld [vmem:[%s266] sm:$0xff]
                %269 = vst [vmem:[%s267] sm:$0xff] %v268
                %v270 = vld [vmem:[%s266 + $0x8] sm:$0xff]
                %271 = vst [vmem:[%s267 + $0x10] sm:$0xff] %v270
              $region94: #{_lambda_.5} parent=88 // loop_footer
                %s265 = sadd.s32 1, %s261
              $region95: #{_lambda_.5} parent=88 // loop_footer_branch
                %260 = sbr.rel target = $region91
              $region96: #{_lambda_.5} parent=88 // loop_exit
                _
            $region89: #{_lambda_.5} parent=80 // pred_fallthru
              _
          $region81: #{_lambda_.5} parent=76 // pred_fallthru
            _
          %288 = vnop
        $region77: #{_lambda_.5} parent=68 // pred_fallthru
          _
      $region69: #{_lambda_.5} parent=5 // pred_fallthru
        _
      %p289 = scmp.le.s32.totalorder 2, %s9
      // Predicated region
      $region112: #{_lambda_.5} parent=5 // pred_check
        %p290 = pneg %p289
      $region113: #{_lambda_.5} parent=5 // pred_check_branch
        %292 = sbr.rel (%p290) target = $region115
      $region114: #{_lambda_.5} parent=5 // pred_region
        %s293 = ssub.s32 %s9, 2
        // Predicated region
        $region116: #{_lambda_.5} parent=114 // pred_check
          %p294 = pneg %p106
        $region117: #{_lambda_.5} parent=114 // pred_check_branch
          %296 = sbr.rel (%p294) target = $region119
        $region118: #{_lambda_.5} parent=114 // pred_region
          %s297 = sand.u32 %s91, 1
          %s298 = sand.u32 %s91, 1
          %s299 = smul.addr %s298, 16
          %s300 = scalar_lea.vmem [#allocation3], %s299
        $region119: #{_lambda_.5} parent=114 // pred_fallthru
          _
      $region115: #{_lambda_.5} parent=5 // pred_fallthru
        _
    $region6: #{_lambda_.5} parent=1 // loop_footer
      %s13 = sadd.s32 1, %s9
    $region7: #{_lambda_.5} parent=1 // loop_footer_branch
      %8 = sbr.rel target = $region3
    $region8: #{_lambda_.5} parent=1 // loop_exit
      _

// kernel: _lambda_.4
$region0: #{_lambda_.4}
  #allocation0 [shape = 'u32[]', space=smem, size = 0x4, offset = 0x4, fixed_abs, tag = 'smem constant byte address 0x4 - core index']
  #allocation1 [shape = 'u32[144,128]{1,0:T(1,128)}', space=vmem, size = 0x12000, scoped, tag = 'internal scratch']
  %s0 = inlined_call_operand.vmem [shape: bf16[320,256], index: 0, kind: input, shape index: {}]
  %s1 = inlined_call_operand.vmem [shape: bf16[16,80], index: 1, kind: input, shape index: {}]
  %s2 = inlined_call_operand.vmem [shape: f32[16,1], index: 2, kind: input, shape index: {}]
  %s3 = inlined_call_operand.vmem [shape: bf16[16,256], index: 3, kind: output, shape index: {0}]
  %s4 = inlined_call_operand.vmem [shape: f32[2,16,2], index: 4, kind: output, shape index: {1}]
  %5 = xla_tuple %s3, %s4
  %s6 = sld [smem:[#allocation0]]
  $region131: #{_lambda_.4} parent=0
    _
  %s8 = ssub.s32 1, %s6
  %s9 = scalar_select 0, %s8, %s6
  $region1: #{_lambda_.4} parent=0
    #allocation2 [shape = 'u8[163840]{0}', space=vmem, size = 0x28000, scoped, tag = 'input window, operand 0']
    #allocation3 [shape = 'u8[8192]{0}', space=vmem, size = 0x2000, scoped, tag = 'output window, operand 0']
    loop: start=0, step=1, limit=4
    $region2: #{_lambda_.4} parent=1 // loop_pre_header
      _
    $region3: #{_lambda_.4} parent=1 // loop_header
      %s11 = sphi 0, %s15
      %p12 = scmp.ge.s32.totalorder %s11, 4
      %s21 = sphi 0, %s23
      %s24 = sphi 0, %s21
      %s25 = sphi 0, %s24
      %s41 = sphi 0, %s25
      %s45 = sphi 0, %s45
      %s47 = sphi 0, %s45
      %s48 = sphi 0, %s47
      %s62 = sphi 0, %s48
      %s66 = sphi 0, %s66
      %s68 = sphi 0, %s66
      %s69 = sphi 0, %s68
      %s83 = sphi 0, %s69
      %s89 = sphi 0, %s91
      %s92 = sphi 0, %s89
      %s93 = sphi 0, %s92
      %s109 = sphi 0, %s93
      %s115 = sphi 0, %s117
      %s118 = sphi 0, %s115
      %s119 = sphi 0, %s118
      %s135 = sphi 0, %s119
    $region4: #{_lambda_.4} parent=1 // loop_header_branch
      %14 = sbr.rel (%p12) target = $region8
    $region5: #{_lambda_.4} parent=1 // loop_body
      %s16 = ssub.s32 %s11, 1
      %s17 = ssub.s32 %s11, 2
      %s18 = sadd.s32 %s11, 1
      %s19 = ssub.s32 %s11, %s18
      %p20 = scmp.eq.s32.totalorder %s19, 0
      %s22 = sadd.s32 %s21, 1
      %s23 = scalar_select %p20, %s21, %s22
      %p26 = pneg %p20
      %p27 = scmp.eq.s32.totalorder %s11, 1
      %p28 = por %p26, %p27
      %p29 = scmp.ne.s32.totalorder %s21, %s24
      %p30 = scmp.eq.s32.totalorder %s11, 0
      %p31 = por %p29, %p30
      %p32 = scmp.ne.s32.totalorder %s21, %s24
      %p33 = scmp.eq.s32.totalorder %s16, 1
      %p34 = por %p32, %p33
      %p35 = scmp.ne.s32.totalorder %s24, %s25
      %p36 = scmp.eq.s32.totalorder %s16, 0
      %p37 = por %p35, %p36
      %p38 = scmp.ne.s32.totalorder %s24, %s25
      %p39 = scmp.eq.s32.totalorder %s17, 1
      %p40 = por %p38, %p39
      %p42 = scmp.ne.s32.totalorder %s25, %s41
      %p43 = scmp.eq.s32.totalorder %s17, 0
      %p44 = por %p42, %p43
      %s46 = sadd.s32 %s45, 1
      %p49 = scmp.eq.s32.totalorder %s11, 1
      %p50 = scmp.ne.s32.totalorder %s45, %s47
      %p51 = scmp.eq.s32.totalorder %s11, 0
      %p52 = por %p50, %p51
      %p53 = scmp.ne.s32.totalorder %s45, %s47
      %p54 = scmp.eq.s32.totalorder %s16, 1
      %p55 = por %p53, %p54
      %p56 = scmp.ne.s32.totalorder %s47, %s48
      %p57 = scmp.eq.s32.totalorder %s16, 0
      %p58 = por %p56, %p57
      %p59 = scmp.ne.s32.totalorder %s47, %s48
      %p60 = scmp.eq.s32.totalorder %s17, 1
      %p61 = por %p59, %p60
      %p63 = scmp.ne.s32.totalorder %s48, %s62
      %p64 = scmp.eq.s32.totalorder %s17, 0
      %p65 = por %p63, %p64
      %s67 = sadd.s32 %s66, 1
      %p70 = scmp.eq.s32.totalorder %s11, 1
      %p71 = scmp.ne.s32.totalorder %s66, %s68
      %p72 = scmp.eq.s32.totalorder %s11, 0
      %p73 = por %p71, %p72
      %p74 = scmp.ne.s32.totalorder %s66, %s68
      %p75 = scmp.eq.s32.totalorder %s16, 1
      %p76 = por %p74, %p75
      %p77 = scmp.ne.s32.totalorder %s68, %s69
      %p78 = scmp.eq.s32.totalorder %s16, 0
      %p79 = por %p77, %p78
      %p80 = scmp.ne.s32.totalorder %s68, %s69
      %p81 = scmp.eq.s32.totalorder %s17, 1
      %p82 = por %p80, %p81
      %p84 = scmp.ne.s32.totalorder %s69, %s83
      %p85 = scmp.eq.s32.totalorder %s17, 0
      %p86 = por %p84, %p85
      %s87 = ssub.s32 %s11, %s18
      %p88 = scmp.eq.s32.totalorder %s87, 0
      %s90 = sadd.s32 %s89, 1
      %s91 = scalar_select %p88, %s89, %s90
      %p94 = pneg %p88
      %p95 = scmp.eq.s32.totalorder %s11, 1
      %p96 = por %p94, %p95
      %p97 = scmp.ne.s32.totalorder %s89, %s92
      %p98 = scmp.eq.s32.totalorder %s11, 0
      %p99 = por %p97, %p98
      %p100 = scmp.ne.s32.totalorder %s89, %s92
      %p101 = scmp.eq.s32.totalorder %s16, 1
      %p102 = por %p100, %p101
      %p103 = scmp.ne.s32.totalorder %s92, %s93
      %p104 = scmp.eq.s32.totalorder %s16, 0
      %p105 = por %p103, %p104
      %p106 = scmp.ne.s32.totalorder %s92, %s93
      %p107 = scmp.eq.s32.totalorder %s17, 1
      %p108 = por %p106, %p107
      %p110 = scmp.ne.s32.totalorder %s93, %s109
      %p111 = scmp.eq.s32.totalorder %s17, 0
      %p112 = por %p110, %p111
      %s113 = ssub.s32 %s11, %s18
      %p114 = scmp.eq.s32.totalorder %s113, 0
      %s116 = sadd.s32 %s115, 1
      %s117 = scalar_select %p114, %s115, %s116
      %p120 = pneg %p114
      %p121 = scmp.eq.s32.totalorder %s11, 1
      %p122 = por %p120, %p121
      %p123 = scmp.ne.s32.totalorder %s115, %s118
      %p124 = scmp.eq.s32.totalorder %s11, 0
      %p125 = por %p123, %p124
      %p126 = scmp.ne.s32.totalorder %s115, %s118
      %p127 = scmp.eq.s32.totalorder %s16, 1
      %p128 = por %p126, %p127
      %p129 = scmp.ne.s32.totalorder %s118, %s119
      %p130 = scmp.eq.s32.totalorder %s16, 0
      %p131 = por %p129, %p130
      %p132 = scmp.ne.s32.totalorder %s118, %s119
      %p133 = scmp.eq.s32.totalorder %s17, 1
      %p134 = por %p132, %p133
      %p136 = scmp.ne.s32.totalorder %s119, %s135
      %p137 = scmp.eq.s32.totalorder %s17, 0
      %p138 = por %p136, %p137
      %p139 = scmp.le.s32.totalorder 1, %s11
      %p140 = scmp.lt.s32.totalorder %s11, 3
      %p141 = pnand %p139, %p140
      %p142 = pneg %p141
      // Predicated region
      $region9: #{_lambda_.4} parent=5 // pred_check
        _
      $region10: #{_lambda_.4} parent=5 // pred_check_branch
        %144 = sbr.rel (%p141) target = $region12
      $region11: #{_lambda_.4} parent=5 // pred_region
        %s145 = ssub.s32 %s11, 1
        // Predicated region
        $region13: #{_lambda_.4} parent=11 // pred_check
          %p146 = pneg %p58
        $region14: #{_lambda_.4} parent=11 // pred_check_branch
          %148 = sbr.rel (%p146) target = $region16
        $region15: #{_lambda_.4} parent=11 // pred_region
          _
        $region16: #{_lambda_.4} parent=11 // pred_fallthru
          _
        // Predicated region
        $region17: #{_lambda_.4} parent=11 // pred_check
          %p149 = pneg %p79
        $region18: #{_lambda_.4} parent=11 // pred_check_branch
          %151 = sbr.rel (%p149) target = $region20
        $region19: #{_lambda_.4} parent=11 // pred_region
          _
        $region20: #{_lambda_.4} parent=11 // pred_fallthru
          _
      $region12: #{_lambda_.4} parent=5 // pred_fallthru
        _
      %p152 = scmp.lt.s32.totalorder %s11, 2
      // Predicated region
      $region21: #{_lambda_.4} parent=5 // pred_check
        %p153 = pneg %p152
      $region22: #{_lambda_.4} parent=5 // pred_check_branch
        %155 = sbr.rel (%p153) target = $region24
      $region23: #{_lambda_.4} parent=5 // pred_region
        // Predicated region
        $region25: #{_lambda_.4} parent=23 // pred_check
          %p156 = pneg %p31
        $region26: #{_lambda_.4} parent=23 // pred_check_branch
          %158 = sbr.rel (%p156) target = $region28
        $region27: #{_lambda_.4} parent=23 // pred_region
          %s159 = sand.u32 %s21, 1
          %s160 = sand.u32 %s21, 1
          %s161 = smul.addr %s160, 160
          %s162 = scalar_lea.vmem [#allocation2], %s161
          %s163 = smul.addr %s11, 4
          %s164 = scalar_lea.vmem %s0, %s163
          // Predicated region
          $region29: #{_lambda_.4} parent=27 // pred_check
            _
          $region30: #{_lambda_.4} parent=27 // pred_check_branch
            %166 = sbr.rel (0) target = $region32
          $region31: #{_lambda_.4} parent=27 // pred_region
            // Predicated region
            $region33: #{_lambda_.4} parent=31 // pred_check
              _
            $region34: #{_lambda_.4} parent=31 // pred_check_branch
              %168 = sbr.rel target = $region36
            $region35: #{_lambda_.4} parent=31 // pred_region
              // Predicated region
              $region48: #{_lambda_.4} parent=35 // pred_check
                _
              $region49: #{_lambda_.4} parent=35 // pred_check_branch
                %261 = sbr.rel (0) target = $region51
              $region50: #{_lambda_.4} parent=35 // pred_region
                loop: start=0, step=1, limit=1
                $region52: #{_lambda_.4} parent=50 // loop_pre_header
                  _
                $region53: #{_lambda_.4} parent=50 // loop_header
                  %s263 = sphi 0, %s267
                  %p264 = scmp.ge.s32.totalorder %s263, 1
                  %s268 = sphi %s164, %s164
                  %s269 = sphi %s162, %s162
                $region54: #{_lambda_.4} parent=50 // loop_header_branch
                  %266 = sbr.rel (%p264) target = $region58
                $region55: #{_lambda_.4} parent=50 // loop_body
                  _
                $region56: #{_lambda_.4} parent=50 // loop_footer
                  %s267 = sadd.s32 1, %s263
                $region57: #{_lambda_.4} parent=50 // loop_footer_branch
                  %262 = sbr.rel target = $region53
                $region58: #{_lambda_.4} parent=50 // loop_exit
                  _
                loop: start=0, step=1, limit=1
                $region59: #{_lambda_.4} parent=50 // loop_pre_header
                  _
                $region60: #{_lambda_.4} parent=50 // loop_header
                  %s272 = sphi 0, %s276
                  %p273 = scmp.ge.s32.totalorder %s272, 1
                  %s277 = sphi %s164, %s164
                  %s278 = sphi %s162, %s162
                $region61: #{_lambda_.4} parent=50 // loop_header_branch
                  %275 = sbr.rel (%p273) target = $region65
                $region62: #{_lambda_.4} parent=50 // loop_body
                  %v279 = vld [vmem:[%s277] sm:$0xf]
                  %280 = vst [vmem:[%s278] sm:$0xf] %v279
                  %v281 = vld [vmem:[%s277 + $0x8] sm:$0xf]
                  %282 = vst [vmem:[%s278 + $0x4] sm:$0xf] %v281
                  %v283 = vld [vmem:[%s277 + $0x10] sm:$0xf]
                  %284 = vst [vmem:[%s278 + $0x8] sm:$0xf] %v283
                  %v285 = vld [vmem:[%s277 + $0x18] sm:$0xf]
                  %286 = vst [vmem:[%s278 + $0xc] sm:$0xf] %v285
                  %v287 = vld [vmem:[%s277 + $0x20] sm:$0xf]
                  %288 = vst [vmem:[%s278 + $0x10] sm:$0xf] %v287
                  %v289 = vld [vmem:[%s277 + $0x28] sm:$0xf]
                  %290 = vst [vmem:[%s278 + $0x14] sm:$0xf] %v289
                  %v291 = vld [vmem:[%s277 + $0x30] sm:$0xf]
                  %292 = vst [vmem:[%s278 + $0x18] sm:$0xf] %v291
                  %v293 = vld [vmem:[%s277 + $0x38] sm:$0xf]
                  %294 = vst [vmem:[%s278 + $0x1c] sm:$0xf] %v293
                  %v295 = vld [vmem:[%s277 + $0x40] sm:$0xf]
                  %296 = vst [vmem:[%s278 + $0x20] sm:$0xf] %v295
                  %v297 = vld [vmem:[%s277 + $0x48] sm:$0xf]
                  %298 = vst [vmem:[%s278 + $0x24] sm:$0xf] %v297
                  %v299 = vld [vmem:[%s277 + $0x50] sm:$0xf]
                  %300 = vst [vmem:[%s278 + $0x28] sm:$0xf] %v299
                  %v301 = vld [vmem:[%s277 + $0x58] sm:$0xf]
                  %302 = vst [vmem:[%s278 + $0x2c] sm:$0xf] %v301
                  %v303 = vld [vmem:[%s277 + $0x60] sm:$0xf]
                  %304 = vst [vmem:[%s278 + $0x30] sm:$0xf] %v303
                  %v305 = vld [vmem:[%s277 + $0x68] sm:$0xf]
                  %306 = vst [vmem:[%s278 + $0x34] sm:$0xf] %v305
                  %v307 = vld [vmem:[%s277 + $0x70] sm:$0xf]
                  %308 = vst [vmem:[%s278 + $0x38] sm:$0xf] %v307
                  %v309 = vld [vmem:[%s277 + $0x78] sm:$0xf]
                  %310 = vst [vmem:[%s278 + $0x3c] sm:$0xf] %v309
                  %v311 = vld [vmem:[%s277 + $0x80] sm:$0xf]
                  %312 = vst [vmem:[%s278 + $0x40] sm:$0xf] %v311
                  %v313 = vld [vmem:[%s277 + $0x88] sm:$0xf]
                  %314 = vst [vmem:[%s278 + $0x44] sm:$0xf] %v313
                  %v315 = vld [vmem:[%s277 + $0x90] sm:$0xf]
                  %316 = vst [vmem:[%s278 + $0x48] sm:$0xf] %v315
                  %v317 = vld [vmem:[%s277 + $0x98] sm:$0xf]
                  %318 = vst [vmem:[%s278 + $0x4c] sm:$0xf] %v317
                  %v319 = vld [vmem:[%s277 + $0xa0] sm:$0xf]
                  %320 = vst [vmem:[%s278 + $0x50] sm:$0xf] %v319
                  %v321 = vld [vmem:[%s277 + $0xa8] sm:$0xf]
                  %322 = vst [vmem:[%s278 + $0x54] sm:$0xf] %v321
                  %v323 = vld [vmem:[%s277 + $0xb0] sm:$0xf]
                  %324 = vst [vmem:[%s278 + $0x58] sm:$0xf] %v323
                  %v325 = vld [vmem:[%s277 + $0xb8] sm:$0xf]
                  %326 = vst [vmem:[%s278 + $0x5c] sm:$0xf] %v325
                  %v327 = vld [vmem:[%s277 + $0xc0] sm:$0xf]
                  %328 = vst [vmem:[%s278 + $0x60] sm:$0xf] %v327
                  %v329 = vld [vmem:[%s277 + $0xc8] sm:$0xf]
                  %330 = vst [vmem:[%s278 + $0x64] sm:$0xf] %v329
                  %v331 = vld [vmem:[%s277 + $0xd0] sm:$0xf]
                  %332 = vst [vmem:[%s278 + $0x68] sm:$0xf] %v331
                  %v333 = vld [vmem:[%s277 + $0xd8] sm:$0xf]
                  %334 = vst [vmem:[%s278 + $0x6c] sm:$0xf] %v333
                  %v335 = vld [vmem:[%s277 + $0xe0] sm:$0xf]
                  %336 = vst [vmem:[%s278 + $0x70] sm:$0xf] %v335
                  %v337 = vld [vmem:[%s277 + $0xe8] sm:$0xf]
                  %338 = vst [vmem:[%s278 + $0x74] sm:$0xf] %v337
                  %v339 = vld [vmem:[%s277 + $0xf0] sm:$0xf]
                  %340 = vst [vmem:[%s278 + $0x78] sm:$0xf] %v339
                  %v341 = vld [vmem:[%s277 + $0xf8] sm:$0xf]
                  %342 = vst [vmem:[%s278 + $0x7c] sm:$0xf] %v341
                  %v343 = vld [vmem:[%s277 + $0x100] sm:$0xf]
                  %344 = vst [vmem:[%s278 + $0x80] sm:$0xf] %v343
                  %v345 = vld [vmem:[%s277 + $0x108] sm:$0xf]
                  %346 = vst [vmem:[%s278 + $0x84] sm:$0xf] %v345
                  %v347 = vld [vmem:[%s277 + $0x110] sm:$0xf]
                  %348 = vst [vmem:[%s278 + $0x88] sm:$0xf] %v347
                  %v349 = vld [vmem:[%s277 + $0x118] sm:$0xf]
                  %350 = vst [vmem:[%s278 + $0x8c] sm:$0xf] %v349
                  %v351 = vld [vmem:[%s277 + $0x120] sm:$0xf]
                  %352 = vst [vmem:[%s278 + $0x90] sm:$0xf] %v351
                  %v353 = vld [vmem:[%s277 + $0x128] sm:$0xf]
                  %354 = vst [vmem:[%s278 + $0x94] sm:$0xf] %v353
                  %v355 = vld [vmem:[%s277 + $0x130] sm:$0xf]
                  %356 = vst [vmem:[%s278 + $0x98] sm:$0xf] %v355
                  %v357 = vld [vmem:[%s277 + $0x138] sm:$0xf]
                  %358 = vst [vmem:[%s278 + $0x9c] sm:$0xf] %v357
                $region63: #{_lambda_.4} parent=50 // loop_footer
                  %s276 = sadd.s32 1, %s272
                $region64: #{_lambda_.4} parent=50 // loop_footer_branch
                  %271 = sbr.rel target = $region60
                $region65: #{_lambda_.4} parent=50 // loop_exit
                  _
              $region51: #{_lambda_.4} parent=35 // pred_fallthru
                _
            $region36: #{_lambda_.4} parent=31 // pred_fallthru
              _
            // Predicated region
            $region37: #{_lambda_.4} parent=31 // pred_check
              _
            $region38: #{_lambda_.4} parent=31 // pred_check_branch
              %170 = sbr.rel (0) target = $region40
            $region39: #{_lambda_.4} parent=31 // pred_region
              loop: start=0, step=1, limit=1
              $region41: #{_lambda_.4} parent=39 // loop_pre_header
                _
              $region42: #{_lambda_.4} parent=39 // loop_header
                %s173 = sphi 0, %s177
                %p174 = scmp.ge.s32.totalorder %s173, 1
                %s178 = sphi %s164, %s164
                %s179 = sphi %s162, %s162
              $region43: #{_lambda_.4} parent=39 // loop_header_branch
                %176 = sbr.rel (%p174) target = $region47
              $region44: #{_lambda_.4} parent=39 // loop_body
                %v180 = vld [vmem:[%s178] sm:$0xf]
                %181 = vst [vmem:[%s179] sm:$0xf] %v180
                %v182 = vld [vmem:[%s178 + $0x8] sm:$0xf]
                %183 = vst [vmem:[%s179 + $0x4] sm:$0xf] %v182
                %v184 = vld [vmem:[%s178 + $0x10] sm:$0xf]
                %185 = vst [vmem:[%s179 + $0x8] sm:$0xf] %v184
                %v186 = vld [vmem:[%s178 + $0x18] sm:$0xf]
                %187 = vst [vmem:[%s179 + $0xc] sm:$0xf] %v186
                %v188 = vld [vmem:[%s178 + $0x20] sm:$0xf]
                %189 = vst [vmem:[%s179 + $0x10] sm:$0xf] %v188
                %v190 = vld [vmem:[%s178 + $0x28] sm:$0xf]
                %191 = vst [vmem:[%s179 + $0x14] sm:$0xf] %v190
                %v192 = vld [vmem:[%s178 + $0x30] sm:$0xf]
                %193 = vst [vmem:[%s179 + $0x18] sm:$0xf] %v192
                %v194 = vld [vmem:[%s178 + $0x38] sm:$0xf]
                %195 = vst [vmem:[%s179 + $0x1c] sm:$0xf] %v194
                %v196 = vld [vmem:[%s178 + $0x40] sm:$0xf]
                %197 = vst [vmem:[%s179 + $0x20] sm:$0xf] %v196
                %v198 = vld [vmem:[%s178 + $0x48] sm:$0xf]
                %199 = vst [vmem:[%s179 + $0x24] sm:$0xf] %v198
                %v200 = vld [vmem:[%s178 + $0x50] sm:$0xf]
                %201 = vst [vmem:[%s179 + $0x28] sm:$0xf] %v200
                %v202 = vld [vmem:[%s178 + $0x58] sm:$0xf]
                %203 = vst [vmem:[%s179 + $0x2c] sm:$0xf] %v202
                %v204 = vld [vmem:[%s178 + $0x60] sm:$0xf]
                %205 = vst [vmem:[%s179 + $0x30] sm:$0xf] %v204
                %v206 = vld [vmem:[%s178 + $0x68] sm:$0xf]
                %207 = vst [vmem:[%s179 + $0x34] sm:$0xf] %v206
                %v208 = vld [vmem:[%s178 + $0x70] sm:$0xf]
                %209 = vst [vmem:[%s179 + $0x38] sm:$0xf] %v208
                %v210 = vld [vmem:[%s178 + $0x78] sm:$0xf]
                %211 = vst [vmem:[%s179 + $0x3c] sm:$0xf] %v210
                %v212 = vld [vmem:[%s178 + $0x80] sm:$0xf]
                %213 = vst [vmem:[%s179 + $0x40] sm:$0xf] %v212
                %v214 = vld [vmem:[%s178 + $0x88] sm:$0xf]
                %215 = vst [vmem:[%s179 + $0x44] sm:$0xf] %v214
                %v216 = vld [vmem:[%s178 + $0x90] sm:$0xf]
                %217 = vst [vmem:[%s179 + $0x48] sm:$0xf] %v216
                %v218 = vld [vmem:[%s178 + $0x98] sm:$0xf]
                %219 = vst [vmem:[%s179 + $0x4c] sm:$0xf] %v218
                %v220 = vld [vmem:[%s178 + $0xa0] sm:$0xf]
                %221 = vst [vmem:[%s179 + $0x50] sm:$0xf] %v220
                %v222 = vld [vmem:[%s178 + $0xa8] sm:$0xf]
                %223 = vst [vmem:[%s179 + $0x54] sm:$0xf] %v222
                %v224 = vld [vmem:[%s178 + $0xb0] sm:$0xf]
                %225 = vst [vmem:[%s179 + $0x58] sm:$0xf] %v224
                %v226 = vld [vmem:[%s178 + $0xb8] sm:$0xf]
                %227 = vst [vmem:[%s179 + $0x5c] sm:$0xf] %v226
                %v228 = vld [vmem:[%s178 + $0xc0] sm:$0xf]
                %229 = vst [vmem:[%s179 + $0x60] sm:$0xf] %v228
                %v230 = vld [vmem:[%s178 + $0xc8] sm:$0xf]
                %231 = vst [vmem:[%s179 + $0x64] sm:$0xf] %v230
                %v232 = vld [vmem:[%s178 + $0xd0] sm:$0xf]
                %233 = vst [vmem:[%s179 + $0x68] sm:$0xf] %v232
                %v234 = vld [vmem:[%s178 + $0xd8] sm:$0xf]
                %235 = vst [vmem:[%s179 + $0x6c] sm:$0xf] %v234
                %v236 = vld [vmem:[%s178 + $0xe0] sm:$0xf]
                %237 = vst [vmem:[%s179 + $0x70] sm:$0xf] %v236
                %v238 = vld [vmem:[%s178 + $0xe8] sm:$0xf]
                %239 = vst [vmem:[%s179 + $0x74] sm:$0xf] %v238
                %v240 = vld [vmem:[%s178 + $0xf0] sm:$0xf]
                %241 = vst [vmem:[%s179 + $0x78] sm:$0xf] %v240
                %v242 = vld [vmem:[%s178 + $0xf8] sm:$0xf]
                %243 = vst [vmem:[%s179 + $0x7c] sm:$0xf] %v242
                %v244 = vld [vmem:[%s178 + $0x100] sm:$0xf]
                %245 = vst [vmem:[%s179 + $0x80] sm:$0xf] %v244
                %v246 = vld [vmem:[%s178 + $0x108] sm:$0xf]
                %247 = vst [vmem:[%s179 + $0x84] sm:$0xf] %v246
                %v248 = vld [vmem:[%s178 + $0x110] sm:$0xf]
                %249 = vst [vmem:[%s179 + $0x88] sm:$0xf] %v248
                %v250 = vld [vmem:[%s178 + $0x118] sm:$0xf]
                %251 = vst [vmem:[%s179 + $0x8c] sm:$0xf] %v250
                %v252 = vld [vmem:[%s178 + $0x120] sm:$0xf]
                %253 = vst [vmem:[%s179 + $0x90] sm:$0xf] %v252
                %v254 = vld [vmem:[%s178 + $0x128] sm:$0xf]
                %255 = vst [vmem:[%s179 + $0x94] sm:$0xf] %v254
                %v256 = vld [vmem:[%s178 + $0x130] sm:$0xf]
                %257 = vst [vmem:[%s179 + $0x98] sm:$0xf] %v256
                %v258 = vld [vmem:[%s178 + $0x138] sm:$0xf]
                %259 = vst [vmem:[%s179 + $0x9c] sm:$0xf] %v258
              $region45: #{_lambda_.4} parent=39 // loop_footer
                %s177 = sadd.s32 1, %s173
              $region46: #{_lambda_.4} parent=39 // loop_footer_branch
                %172 = sbr.rel target = $region42
              $region47: #{_lambda_.4} parent=39 // loop_exit
                _
            $region40: #{_lambda_.4} parent=31 // pred_fallthru
              _
          $region32: #{_lambda_.4} parent=27 // pred_fallthru
            _
          %359 = vnop
        $region28: #{_lambda_.4} parent=23 // pred_fallthru
          _
      $region24: #{_lambda_.4} parent=5 // pred_fallthru
        _
      %p360 = scmp.le.s32.totalorder 1, %s11
      %p361 = scmp.lt.s32.totalorder %s11, 3
      %p362 = pnand %p360, %p361
      %p363 = pneg %p362
      // Predicated region
      $region66: #{_lambda_.4} parent=5 // pred_check
        _
      $region67: #{_lambda_.4} parent=5 // pred_check_branch
        %365 = sbr.rel (%p362) target = $region69
      $region68: #{_lambda_.4} parent=5 // pred_region
        %s366 = ssub.s32 %s11, 1
        %s367 = sand.u32 %s24, 1
        %s368 = sand.u32 %s24, 1
        %s369 = smul.addr %s368, 160
        %s370 = scalar_lea.vmem [#allocation2], %s369
        // Predicated region
        $region70: #{_lambda_.4} parent=68 // pred_check
          %p371 = pneg %p37
        $region71: #{_lambda_.4} parent=68 // pred_check_branch
          %373 = sbr.rel (%p371) target = $region73
        $region72: #{_lambda_.4} parent=68 // pred_region
          _
        $region73: #{_lambda_.4} parent=68 // pred_fallthru
          _
        %s374 = sand.u32 %s24, 1
        %s375 = sand.u32 %s24, 1
        %s376 = smul.addr %s375, 160
        %s377 = scalar_lea.vmem [#allocation2], %s376
        %p378 = pneg %p37
        %p379 = pneg %p34
        %p380 = pneg %p58
        %p381 = pneg %p55
        %p382 = pneg %p79
        %p383 = pneg %p76
        %p384 = pneg %p105
        %p385 = pneg %p102
        %s386 = sand.u32 %s92, 1
        %s387 = sand.u32 %s92, 1
        %s388 = smul.addr %s387, 8
        %s389 = scalar_lea.vmem [#allocation3], %s388
        %p390 = pneg %p131
        %p391 = pneg %p128
        %p392 = scmp.lt.s32.totalorder %s16, 1
        %s393 = scalar_select %p392, %s16, 1
        %s394 = smul.addr %s393, 2
        %s395 = smul.addr %s394, 8
        %s396 = scalar_lea.vmem %s4, %s395
        %p397 = scmp.lt.s32.totalorder %s16, 1
        %s398 = scalar_select %p397, %s16, 1
        %s399 = smul.addr %s398, 2
        %s400 = smul.addr %s399, 8
        %s401 = scalar_lea.vmem %s4, %s400
        %v403 = vld [vmem:[%s1] sm:$0xf]
        %v404 = vld [vmem:[%s1 + $0x4] sm:$0xf]
        %v405 = vld [vmem:[%s370] sm:$0xf]
        %v406 = vld [vmem:[%s370 + $0x4] sm:$0xf]
        %v407 = vld [vmem:[%s370 + $0x8] sm:$0xf]
        %v408 = vld [vmem:[%s370 + $0xc] sm:$0xf]
        %v409 = vld [vmem:[%s370 + $0x10] sm:$0xf]
        %v410 = vld [vmem:[%s370 + $0x14] sm:$0xf]
        %v411 = vld [vmem:[%s370 + $0x18] sm:$0xf]
        %v412 = vld [vmem:[%s370 + $0x1c] sm:$0xf]
        %v413 = vld [vmem:[%s370 + $0x20] sm:$0xf]
        %v414 = vld [vmem:[%s370 + $0x24] sm:$0xf]
        %v417 = vunpack.c.l.b16 %v403
        %v418 = vunpack.c.l.b16 %v404
        %v419 = vpack.c.b16 %v418, %v417
        %v430 = vunpack.c.l.b16 %v405
        %v431 = vunpack.c.l.b16 %v406
        %v432 = vunpack.c.l.b16 %v407
        %v433 = vunpack.c.l.b16 %v408
        %v434 = vunpack.c.l.b16 %v409
        %v435 = vunpack.c.l.b16 %v410
        %v436 = vunpack.c.l.b16 %v411
        %v437 = vunpack.c.l.b16 %v412
        %v438 = vunpack.c.l.b16 %v413
        %v439 = vunpack.c.l.b16 %v414
        %v440 = vpack.c.b16 %v431, %v430
        %v441 = vpack.c.b16 %v433, %v432
        %v442 = vpack.c.b16 %v435, %v434
        %v443 = vpack.c.b16 %v437, %v436
        %v444 = vpack.c.b16 %v439, %v438
        %vm450 = vcmask 654336
        %v452 = vsel %vm450, %v419, 0
        %454 = vmatprep.subr.bf16.mxu0 0
        %455 = vmatpush1.bf16.msra.mxu0 %v440
        %456 = vmatprep.subr.bf16.mxu0 0
        %457 = vmatpush1.bf16.msra.mxu0 %v441
        %458 = vmatprep.subr.bf16.mxu0 0
        %459 = vmatpush1.bf16.msra.mxu0 %v442
        %460 = vmatprep.subr.bf16.mxu0 0
        %461 = vmatpush1.bf16.msra.mxu0 %v443
        %462 = vmatprep.subr.bf16.mxu0 0
        %463 = vmatpush1.bf16.msra.mxu0 %v444
        %464 = vmatprep.subr.bf16.mxu0 0
        %465 = vmatpush1.bf16.msra.mxu0 0
        %466 = vmatprep.subr.bf16.mxu0 0
        %467 = vmatpush1.bf16.msra.mxu0 0
        %468 = vmatprep.subr.bf16.mxu0 0
        %469 = vmatpush1.bf16.msra.mxu0 0
        %470 = vmatprep.subr.bf16.mxu0 0
        %471 = vmatpush1.bf16.msra.mxu0 0
        %472 = vmatprep.subr.bf16.mxu0 0
        %473 = vmatpush1.bf16.msra.mxu0 0
        %474 = vmatprep.subr.bf16.mxu0 0
        %475 = vmatpush1.bf16.msra.mxu0 0
        %476 = vmatprep.subr.bf16.mxu0 0
        %477 = vmatpush1.bf16.msra.mxu0 0
        %478 = vmatprep.subr.bf16.mxu0 0
        %479 = vmatpush1.bf16.msra.mxu0 0
        %480 = vmatprep.subr.bf16.mxu0 0
        %481 = vmatpush1.bf16.msra.mxu0 0
        %482 = vmatprep.subr.bf16.mxu0 0
        %483 = vmatpush1.bf16.msra.mxu0 0
        %484 = vmatprep.subr.bf16.mxu0 0
        %485 = vmatpush1.bf16.msra.mxu0 0
        %486 = vmatprep.mubr.bf16.mxu0 0
        %487 = vmatmul.mubr.bf16.gmra.mrb[0].mxu0 %v452
        %v488 = vpop.f32.mrb[0].mxu0
        %v489 = vadd.f32 0.0, %v488
        %v490 = vpop.f32.mrb[0].mxu0
        %v491 = vpop.f32.mrb[0].mxu0
        %v492 = vadd.f32 0.0, %v491
        %v493 = vpop.f32.mrb[0].mxu0
        %494 = vdwg.mxu0
        %v495 = vld [vmem:[%s370 + $0x28] sm:$0xf]
        %v496 = vld [vmem:[%s370 + $0x2c] sm:$0xf]
        %v497 = vld [vmem:[%s370 + $0x30] sm:$0xf]
        %v498 = vld [vmem:[%s370 + $0x34] sm:$0xf]
        %v499 = vld [vmem:[%s370 + $0x38] sm:$0xf]
        %v500 = vld [vmem:[%s370 + $0x3c] sm:$0xf]
        %v501 = vld [vmem:[%s370 + $0x40] sm:$0xf]
        %v502 = vld [vmem:[%s370 + $0x44] sm:$0xf]
        %v503 = vld [vmem:[%s370 + $0x48] sm:$0xf]
        %v504 = vld [vmem:[%s370 + $0x4c] sm:$0xf]
        %v515 = vunpack.c.l.b16 %v495
        %v516 = vunpack.c.l.b16 %v496
        %v517 = vunpack.c.l.b16 %v497
        %v518 = vunpack.c.l.b16 %v498
        %v519 = vunpack.c.l.b16 %v499
        %v520 = vunpack.c.l.b16 %v500
        %v521 = vunpack.c.l.b16 %v501
        %v522 = vunpack.c.l.b16 %v502
        %v523 = vunpack.c.l.b16 %v503
        %v524 = vunpack.c.l.b16 %v504
        %v525 = vpack.c.b16 %v516, %v515
        %v526 = vpack.c.b16 %v518, %v517
        %v527 = vpack.c.b16 %v520, %v519
        %v528 = vpack.c.b16 %v522, %v521
        %v529 = vpack.c.b16 %v524, %v523
        %535 = vmatprep.subr.bf16.mxu0 0
        %536 = vmatpush1.bf16.msra.mxu0 %v525
        %537 = vmatprep.subr.bf16.mxu0 0
        %538 = vmatpush1.bf16.msra.mxu0 %v526
        %539 = vmatprep.subr.bf16.mxu0 0
        %540 = vmatpush1.bf16.msra.mxu0 %v527
        %541 = vmatprep.subr.bf16.mxu0 0
        %542 = vmatpush1.bf16.msra.mxu0 %v528
        %543 = vmatprep.subr.bf16.mxu0 0
        %544 = vmatpush1.bf16.msra.mxu0 %v529
        %545 = vmatprep.subr.bf16.mxu0 0
        %546 = vmatpush1.bf16.msra.mxu0 0
        %547 = vmatprep.subr.bf16.mxu0 0
        %548 = vmatpush1.bf16.msra.mxu0 0
        %549 = vmatprep.subr.bf16.mxu0 0
        %550 = vmatpush1.bf16.msra.mxu0 0
        %551 = vmatprep.subr.bf16.mxu0 0
        %552 = vmatpush1.bf16.msra.mxu0 0
        %553 = vmatprep.subr.bf16.mxu0 0
        %554 = vmatpush1.bf16.msra.mxu0 0
        %555 = vmatprep.subr.bf16.mxu0 0
        %556 = vmatpush1.bf16.msra.mxu0 0
        %557 = vmatprep.subr.bf16.mxu0 0
        %558 = vmatpush1.bf16.msra.mxu0 0
        %559 = vmatprep.subr.bf16.mxu0 0
        %560 = vmatpush1.bf16.msra.mxu0 0
        %561 = vmatprep.subr.bf16.mxu0 0
        %562 = vmatpush1.bf16.msra.mxu0 0
        %563 = vmatprep.subr.bf16.mxu0 0
        %564 = vmatpush1.bf16.msra.mxu0 0
        %565 = vmatprep.subr.bf16.mxu0 0
        %566 = vmatpush1.bf16.msra.mxu0 0
        %567 = vmatprep.mubr.bf16.mxu0 0
        %568 = vmatmul.mubr.bf16.gmra.mrb[0].mxu0 %v452
        %v569 = vpop.f32.mrb[0].mxu0
        %v570 = vadd.f32 0.0, %v569
        %v571 = vpop.f32.mrb[0].mxu0
        %v572 = vpop.f32.mrb[0].mxu0
        %v573 = vadd.f32 0.0, %v572
        %v574 = vpop.f32.mrb[0].mxu0
        %575 = vdwg.mxu0
        %v576 = vmax.f32 %v489, %v570
        %v577 = vmax.f32 %v492, %v573
        %v578 = vld [vmem:[%s370 + $0x50] sm:$0xf]
        %v579 = vld [vmem:[%s370 + $0x54] sm:$0xf]
        %v580 = vld [vmem:[%s370 + $0x58] sm:$0xf]
        %v581 = vld [vmem:[%s370 + $0x5c] sm:$0xf]
        %v582 = vld [vmem:[%s370 + $0x60] sm:$0xf]
        %v583 = vld [vmem:[%s370 + $0x64] sm:$0xf]
        %v584 = vld [vmem:[%s370 + $0x68] sm:$0xf]
        %v585 = vld [vmem:[%s370 + $0x6c] sm:$0xf]
        %v586 = vld [vmem:[%s370 + $0x70] sm:$0xf]
        %v587 = vld [vmem:[%s370 + $0x74] sm:$0xf]
        %v598 = vunpack.c.l.b16 %v578
        %v599 = vunpack.c.l.b16 %v579
        %v600 = vunpack.c.l.b16 %v580
        %v601 = vunpack.c.l.b16 %v581
        %v602 = vunpack.c.l.b16 %v582
        %v603 = vunpack.c.l.b16 %v583
        %v604 = vunpack.c.l.b16 %v584
        %v605 = vunpack.c.l.b16 %v585
        %v606 = vunpack.c.l.b16 %v586
        %v607 = vunpack.c.l.b16 %v587
        %v608 = vpack.c.b16 %v599, %v598
        %v609 = vpack.c.b16 %v601, %v600
        %v610 = vpack.c.b16 %v603, %v602
        %v611 = vpack.c.b16 %v605, %v604
        %v612 = vpack.c.b16 %v607, %v606
        %618 = vmatprep.subr.bf16.mxu0 0
        %619 = vmatpush1.bf16.msra.mxu0 %v608
        %620 = vmatprep.subr.bf16.mxu0 0
        %621 = vmatpush1.bf16.msra.mxu0 %v609
        %622 = vmatprep.subr.bf16.mxu0 0
        %623 = vmatpush1.bf16.msra.mxu0 %v610
        %624 = vmatprep.subr.bf16.mxu0 0
        %625 = vmatpush1.bf16.msra.mxu0 %v611
        %626 = vmatprep.subr.bf16.mxu0 0
        %627 = vmatpush1.bf16.msra.mxu0 %v612
        %628 = vmatprep.subr.bf16.mxu0 0
        %629 = vmatpush1.bf16.msra.mxu0 0
        %630 = vmatprep.subr.bf16.mxu0 0
        %631 = vmatpush1.bf16.msra.mxu0 0
        %632 = vmatprep.subr.bf16.mxu0 0
        %633 = vmatpush1.bf16.msra.mxu0 0
        %634 = vmatprep.subr.bf16.mxu0 0
        %635 = vmatpush1.bf16.msra.mxu0 0
        %636 = vmatprep.subr.bf16.mxu0 0
        %637 = vmatpush1.bf16.msra.mxu0 0
        %638 = vmatprep.subr.bf16.mxu0 0
        %639 = vmatpush1.bf16.msra.mxu0 0
        %640 = vmatprep.subr.bf16.mxu0 0
        %641 = vmatpush1.bf16.msra.mxu0 0
        %642 = vmatprep.subr.bf16.mxu0 0
        %643 = vmatpush1.bf16.msra.mxu0 0
        %644 = vmatprep.subr.bf16.mxu0 0
        %645 = vmatpush1.bf16.msra.mxu0 0
        %646 = vmatprep.subr.bf16.mxu0 0
        %647 = vmatpush1.bf16.msra.mxu0 0
        %648 = vmatprep.subr.bf16.mxu0 0
        %649 = vmatpush1.bf16.msra.mxu0 0
        %650 = vmatprep.mubr.bf16.mxu0 0
        %651 = vmatmul.mubr.bf16.gmra.mrb[0].mxu0 %v452
        %v652 = vpop.f32.mrb[0].mxu0
        %v653 = vadd.f32 0.0, %v652
        %v654 = vpop.f32.mrb[0].mxu0
        %v655 = vpop.f32.mrb[0].mxu0
        %v656 = vadd.f32 0.0, %v655
        %v657 = vpop.f32.mrb[0].mxu0
        %658 = vdwg.mxu0
        %v659 = vmax.f32 %v576, %v653
        %v660 = vmax.f32 %v577, %v656
        %v661 = vld [vmem:[%s370 + $0x78] sm:$0xf]
        %v662 = vld [vmem:[%s370 + $0x7c] sm:$0xf]
        %v663 = vld [vmem:[%s370 + $0x80] sm:$0xf]
        %v664 = vld [vmem:[%s370 + $0x84] sm:$0xf]
        %v665 = vld [vmem:[%s370 + $0x88] sm:$0xf]
        %v666 = vld [vmem:[%s370 + $0x8c] sm:$0xf]
        %v667 = vld [vmem:[%s370 + $0x90] sm:$0xf]
        %v668 = vld [vmem:[%s370 + $0x94] sm:$0xf]
        %v669 = vld [vmem:[%s370 + $0x98] sm:$0xf]
        %v670 = vld [vmem:[%s370 + $0x9c] sm:$0xf]
        %v681 = vunpack.c.l.b16 %v661
        %v682 = vunpack.c.l.b16 %v662
        %v683 = vunpack.c.l.b16 %v663
        %v684 = vunpack.c.l.b16 %v664
        %v685 = vunpack.c.l.b16 %v665
        %v686 = vunpack.c.l.b16 %v666
        %v687 = vunpack.c.l.b16 %v667
        %v688 = vunpack.c.l.b16 %v668
        %v689 = vunpack.c.l.b16 %v669
        %v690 = vunpack.c.l.b16 %v670
        %v691 = vpack.c.b16 %v682, %v681
        %v692 = vpack.c.b16 %v684, %v683
        %v693 = vpack.c.b16 %v686, %v685
        %v694 = vpack.c.b16 %v688, %v687
        %v695 = vpack.c.b16 %v690, %v689
        %701 = vmatprep.subr.bf16.mxu0 0
        %702 = vmatpush1.bf16.msra.mxu0 %v691
        %703 = vmatprep.subr.bf16.mxu0 0
        %704 = vmatpush1.bf16.msra.mxu0 %v692
        %705 = vmatprep.subr.bf16.mxu0 0
        %706 = vmatpush1.bf16.msra.mxu0 %v693
        %707 = vmatprep.subr.bf16.mxu0 0
        %708 = vmatpush1.bf16.msra.mxu0 %v694
        %709 = vmatprep.subr.bf16.mxu0 0
        %710 = vmatpush1.bf16.msra.mxu0 %v695
        %711 = vmatprep.subr.bf16.mxu0 0
        %712 = vmatpush1.bf16.msra.mxu0 0
        %713 = vmatprep.subr.bf16.mxu0 0
        %714 = vmatpush1.bf16.msra.mxu0 0
        %715 = vmatprep.subr.bf16.mxu0 0
        %716 = vmatpush1.bf16.msra.mxu0 0
        %717 = vmatprep.subr.bf16.mxu0 0
        %718 = vmatpush1.bf16.msra.mxu0 0
        %719 = vmatprep.subr.bf16.mxu0 0
        %720 = vmatpush1.bf16.msra.mxu0 0
        %721 = vmatprep.subr.bf16.mxu0 0
        %722 = vmatpush1.bf16.msra.mxu0 0
        %723 = vmatprep.subr.bf16.mxu0 0
        %724 = vmatpush1.bf16.msra.mxu0 0
        %725 = vmatprep.subr.bf16.mxu0 0
        %726 = vmatpush1.bf16.msra.mxu0 0
        %727 = vmatprep.subr.bf16.mxu0 0
        %728 = vmatpush1.bf16.msra.mxu0 0
        %729 = vmatprep.subr.bf16.mxu0 0
        %730 = vmatpush1.bf16.msra.mxu0 0
        %731 = vmatprep.subr.bf16.mxu0 0
        %732 = vmatpush1.bf16.msra.mxu0 0
        %733 = vmatprep.mubr.bf16.mxu0 0
        %734 = vmatmul.mubr.bf16.gmra.mrb[0].mxu0 %v452
        %v735 = vpop.f32.mrb[0].mxu0
        %v736 = vadd.f32 0.0, %v735
        %v737 = vpop.f32.mrb[0].mxu0
        %v738 = vpop.f32.mrb[0].mxu0
        %v739 = vadd.f32 0.0, %v738
        %v740 = vpop.f32.mrb[0].mxu0
        %741 = vdwg.mxu0
        %v742 = vmax.f32 %v659, %v736
        %v743 = vmax.f32 %v660, %v739
        %v744 = vld [vmem:[%s2] sm:$0xff]
        %v745 = vld [vmem:[%s2 + $0x8] sm:$0xff]
        %747 = vset.pattern.permute.xlu0 0
        %748 = vperm.xlu0 %747, %v744
        %v749 = vpop.permute.xlu0 %748
        %752 = vset.pattern.permute.xlu0 0
        %753 = vperm.xlu0 %752, %v745
        %v754 = vpop.permute.xlu0 %753
        %v756 = vadd.f32 %v742, %v749
        %v757 = vadd.f32 %v743, %v754
        %v758 = vmul.f32 %v756, 0.01
        %v759 = vmul.f32 %v757, 0.01
        %v760 = vmax.f32 %v756, %v758
        %v761 = vmax.f32 %v757, %v759
        %v762 = vpack.c.bf16 %v761, %v760
        %v764 = vunpack.c.l.b16 %v762
        %v765 = vunpack.c.h.b16 %v762
        %v766 = vpack.c.b16 %v764, %v764
        %v767 = vpack.c.b16 %v765, %v765
        %770 = vst [vmem:[%s389] sm:$0xf] %v766
        %771 = vst [vmem:[%s389 + $0x4] sm:$0xf] %v767
        %s772 = smul.u32 %s16, 128
        %v773 = vlaneseq
        %v774 = vand.u32 %v773, 127
        %v775 = vstv %s772
        %v776 = vadd.s32 %v775, %v774
        %vm777 = vcmp.lt.s32.totalorder %v776, 192
        %v778 = vsel %vm777, 1, 0
        %vm779 = vcmp.eq.s32.totalorder %v778, 1
        %v780 = vsel %vm779, %v760, 0.0
        %v781 = vsel %vm779, %v761, 0.0
        %782 = vadd.xlane.f32.xlu0 %v780
        %v783 = vpop.xlane.xlu0 %782
        %784 = vadd.xlane.f32.xlu0 %v781
        %v785 = vpop.xlane.xlu0 %784
        %vm786 = vcmask 7168
        %787 = vst.msk [vmem:[%s401] sm:$0xff] %vm786, %v783
        %788 = vst.msk [vmem:[%s401 + $0x8] sm:$0xff] %vm786, %v785
        %v789 = vmul.f32 %v780, %v780
        %v790 = vmul.f32 %v781, %v781
        %791 = vadd.xlane.f32.xlu0 %v789
        %v792 = vpop.xlane.xlu0 %791
        %793 = vadd.xlane.f32.xlu0 %v790
        %v794 = vpop.xlane.xlu0 %793
        %vm795 = vcmask 15368
        %796 = vst.msk [vmem:[%s401] sm:$0xff] %vm795, %v792
        %797 = vst.msk [vmem:[%s401 + $0x8] sm:$0xff] %vm795, %v794
        %s798 = sand.u32 %s92, 1
        %s799 = sand.u32 %s92, 1
        %s800 = smul.addr %s799, 8
        %s801 = scalar_lea.vmem [#allocation3], %s800
        %p802 = scmp.lt.s32.totalorder %s16, 1
        %s803 = scalar_select %p802, %s16, 1
        %s804 = smul.addr %s803, 2
        %s805 = smul.addr %s804, 8
        %s806 = scalar_lea.vmem %s4, %s805
        // Predicated region
        $region74: #{_lambda_.4} parent=68 // pred_check
          %p807 = pneg %p102
        $region75: #{_lambda_.4} parent=68 // pred_check_branch
          %809 = sbr.rel (%p807) target = $region77
        $region76: #{_lambda_.4} parent=68 // pred_region
          %s810 = smul.addr %s16, 4
          %s811 = scalar_lea.vmem %s3, %s810
          // Predicated region
          $region78: #{_lambda_.4} parent=76 // pred_check
            _
          $region79: #{_lambda_.4} parent=76 // pred_check_branch
            %813 = sbr.rel (0) target = $region81
          $region80: #{_lambda_.4} parent=76 // pred_region
            // Predicated region
            $region82: #{_lambda_.4} parent=80 // pred_check
              _
            $region83: #{_lambda_.4} parent=80 // pred_check_branch
              %815 = sbr.rel target = $region85
            $region84: #{_lambda_.4} parent=80 // pred_region
              // Predicated region
              $region97: #{_lambda_.4} parent=84 // pred_check
                _
              $region98: #{_lambda_.4} parent=84 // pred_check_branch
                %832 = sbr.rel (0) target = $region100
              $region99: #{_lambda_.4} parent=84 // pred_region
                loop: start=0, step=1, limit=1
                $region101: #{_lambda_.4} parent=99 // loop_pre_header
                  _
                $region102: #{_lambda_.4} parent=99 // loop_header
                  %s834 = sphi 0, %s838
                  %p835 = scmp.ge.s32.totalorder %s834, 1
                  %s839 = sphi %s801, %s801
                  %s840 = sphi %s811, %s811
                $region103: #{_lambda_.4} parent=99 // loop_header_branch
                  %837 = sbr.rel (%p835) target = $region107
                $region104: #{_lambda_.4} parent=99 // loop_body
                  _
                $region105: #{_lambda_.4} parent=99 // loop_footer
                  %s838 = sadd.s32 1, %s834
                $region106: #{_lambda_.4} parent=99 // loop_footer_branch
                  %833 = sbr.rel target = $region102
                $region107: #{_lambda_.4} parent=99 // loop_exit
                  _
                loop: start=0, step=1, limit=1
                $region108: #{_lambda_.4} parent=99 // loop_pre_header
                  _
                $region109: #{_lambda_.4} parent=99 // loop_header
                  %s843 = sphi 0, %s847
                  %p844 = scmp.ge.s32.totalorder %s843, 1
                  %s848 = sphi %s801, %s801
                  %s849 = sphi %s811, %s811
                $region110: #{_lambda_.4} parent=99 // loop_header_branch
                  %846 = sbr.rel (%p844) target = $region114
                $region111: #{_lambda_.4} parent=99 // loop_body
                  %v850 = vld [vmem:[%s848] sm:$0xf]
                  %851 = vst [vmem:[%s849] sm:$0xf] %v850
                  %v852 = vld [vmem:[%s848 + $0x4] sm:$0xf]
                  %853 = vst [vmem:[%s849 + $0x8] sm:$0xf] %v852
                $region112: #{_lambda_.4} parent=99 // loop_footer
                  %s847 = sadd.s32 1, %s843
                $region113: #{_lambda_.4} parent=99 // loop_footer_branch
                  %842 = sbr.rel target = $region109
                $region114: #{_lambda_.4} parent=99 // loop_exit
                  _
              $region100: #{_lambda_.4} parent=84 // pred_fallthru
                _
            $region85: #{_lambda_.4} parent=80 // pred_fallthru
              _
            // Predicated region
            $region86: #{_lambda_.4} parent=80 // pred_check
              _
            $region87: #{_lambda_.4} parent=80 // pred_check_branch
              %817 = sbr.rel (0) target = $region89
            $region88: #{_lambda_.4} parent=80 // pred_region
              loop: start=0, step=1, limit=1
              $region90: #{_lambda_.4} parent=88 // loop_pre_header
                _
              $region91: #{_lambda_.4} parent=88 // loop_header
                %s820 = sphi 0, %s824
                %p821 = scmp.ge.s32.totalorder %s820, 1
                %s825 = sphi %s801, %s801
                %s826 = sphi %s811, %s811
              $region92: #{_lambda_.4} parent=88 // loop_header_branch
                %823 = sbr.rel (%p821) target = $region96
              $region93: #{_lambda_.4} parent=88 // loop_body
                %v827 = vld [vmem:[%s825] sm:$0xf]
                %828 = vst [vmem:[%s826] sm:$0xf] %v827
                %v829 = vld [vmem:[%s825 + $0x4] sm:$0xf]
                %830 = vst [vmem:[%s826 + $0x8] sm:$0xf] %v829
              $region94: #{_lambda_.4} parent=88 // loop_footer
                %s824 = sadd.s32 1, %s820
              $region95: #{_lambda_.4} parent=88 // loop_footer_branch
                %819 = sbr.rel target = $region91
              $region96: #{_lambda_.4} parent=88 // loop_exit
                _
            $region89: #{_lambda_.4} parent=80 // pred_fallthru
              _
          $region81: #{_lambda_.4} parent=76 // pred_fallthru
            _
          %854 = vnop
        $region77: #{_lambda_.4} parent=68 // pred_fallthru
          _
        // Predicated region
        $region115: #{_lambda_.4} parent=68 // pred_check
          %p855 = pneg %p128
        $region116: #{_lambda_.4} parent=68 // pred_check_branch
          %857 = sbr.rel (%p855) target = $region118
        $region117: #{_lambda_.4} parent=68 // pred_region
          _
        $region118: #{_lambda_.4} parent=68 // pred_fallthru
          _
      $region69: #{_lambda_.4} parent=5 // pred_fallthru
        _
      %p858 = scmp.le.s32.totalorder 2, %s11
      // Predicated region
      $region119: #{_lambda_.4} parent=5 // pred_check
        %p859 = pneg %p858
      $region120: #{_lambda_.4} parent=5 // pred_check_branch
        %861 = sbr.rel (%p859) target = $region122
      $region121: #{_lambda_.4} parent=5 // pred_region
        %s862 = ssub.s32 %s11, 2
        // Predicated region
        $region123: #{_lambda_.4} parent=121 // pred_check
          %p863 = pneg %p108
        $region124: #{_lambda_.4} parent=121 // pred_check_branch
          %865 = sbr.rel (%p863) target = $region126
        $region125: #{_lambda_.4} parent=121 // pred_region
          %s866 = sand.u32 %s93, 1
          %s867 = sand.u32 %s93, 1
          %s868 = smul.addr %s867, 8
          %s869 = scalar_lea.vmem [#allocation3], %s868
        $region126: #{_lambda_.4} parent=121 // pred_fallthru
          _
        // Predicated region
        $region127: #{_lambda_.4} parent=121 // pred_check
          %p870 = pneg %p134
        $region128: #{_lambda_.4} parent=121 // pred_check_branch
          %872 = sbr.rel (%p870) target = $region130
        $region129: #{_lambda_.4} parent=121 // pred_region
          %p873 = scmp.lt.s32.totalorder %s17, 1
          %s874 = scalar_select %p873, %s17, 1
          %s875 = smul.addr %s874, 2
          %s876 = smul.addr %s875, 8
          %s877 = scalar_lea.vmem %s4, %s876
        $region130: #{_lambda_.4} parent=121 // pred_fallthru
          _
      $region122: #{_lambda_.4} parent=5 // pred_fallthru
        _
    $region6: #{_lambda_.4} parent=1 // loop_footer
      %s15 = sadd.s32 1, %s11
    $region7: #{_lambda_.4} parent=1 // loop_footer_branch
      %10 = sbr.rel target = $region3
    $region8: #{_lambda_.4} parent=1 // loop_exit
      _

</llo_original>
